<compile_context>
chip_gen: v7x
topology: tpu7x:2x2x1
jax: 0.10.0
libtpu: 0.0.40
codegen_flags: <defaults>
</compile_context>

<pallas_src>
import functools
import math

import jax
import jax.numpy as jnp
from jax.experimental import pallas as pl
from jax.experimental.pallas import tpu as pltpu

LANE = 128       # pad every feature dim to this (lane-dense stores / full MXU columns)
TILE_M = 256     # output row block (multiple of 256: MXU-aligned on v6e/v7x, 128-mult for v5e)
TILE_K = 256     # reduction block over A's columns
VMEM_LIMIT = 32 * 1024 * 1024   # explicit scoped-VMEM budget (safe on v5e/v6e/v7x)


def _round_up(x, m):
    return ((x + m - 1) // m) * m


# --------------------------------------------------------------------------- projection
def _project_kernel(x_ref, w_ref, out_ref):
    # out = X @ W   (bf16 in, f32 MXU accumulation, bf16 out)
    out_ref[...] = jnp.dot(
        x_ref[...], w_ref[...], preferred_element_type=jnp.float32
    ).astype(out_ref.dtype)


def project(x, w, *, tile_m=TILE_M):
    n_pad, c_in = x.shape
    c_out = w.shape[1]
    return pl.pallas_call(
        _project_kernel,
        out_shape=jax.ShapeDtypeStruct((n_pad, c_out), jnp.bfloat16),
        grid_spec=pltpu.PrefetchScalarGridSpec(
            num_scalar_prefetch=0,
            grid=(n_pad // tile_m,),
            in_specs=[
                pl.BlockSpec((tile_m, c_in), lambda i: (i, 0)),
                pl.BlockSpec((c_in, c_out), lambda i: (0, 0)),   # W resident
            ],
            out_specs=pl.BlockSpec((tile_m, c_out), lambda i: (i, 0)),
        ),
        compiler_params=pltpu.CompilerParams(
            dimension_semantics=("parallel",),
            vmem_limit_bytes=VMEM_LIMIT,
        ),
        cost_estimate=pl.CostEstimate(
            flops=2 * n_pad * c_in * c_out,
            transcendentals=0,
            bytes_accessed=2 * (n_pad * c_in + c_in * c_out + n_pad * c_out),
        ),
    )(x, w)


# --------------------------------------------------------------------------- aggregation
def _aggregate_kernel(a_ref, xw_ref, b_ref, out_ref, acc_ref, *, tile_k, activation):
    k = pl.program_id(1)

    @pl.when(k == 0)
    def _():
        acc_ref[...] = jnp.zeros_like(acc_ref)

    # XW is fully resident in VMEM (constant index_map); slice the K block we need.
    k0 = pl.multiple_of(k * tile_k, tile_k)
    xw_k = xw_ref[pl.ds(k0, tile_k), :]
    acc_ref[...] += jnp.dot(a_ref[...], xw_k, preferred_element_type=jnp.float32)

    @pl.when(k == pl.num_programs(1) - 1)
    def _():
        o = acc_ref[...] + b_ref[...]
        if activation == "relu":
            out_ref[...] = jnp.maximum(o, 0.0).astype(out_ref.dtype)
        else:  # sigmoid: exp and reciprocal both go to the EUP slot
            out_ref[...] = pl.reciprocal(1.0 + jnp.exp(-o), approx=True).astype(
                out_ref.dtype
            )


def gcn_aggregate(a, xw, b, *, activation, out_dtype, tile_m=TILE_M, tile_k=TILE_K):
    n_pad = a.shape[0]
    c = xw.shape[1]
    kernel = functools.partial(_aggregate_kernel, tile_k=tile_k, activation=activation)
    out_bytes = jnp.dtype(out_dtype).itemsize
    return pl.pallas_call(
        kernel,
        out_shape=jax.ShapeDtypeStruct((n_pad, c), out_dtype),
        grid_spec=pltpu.PrefetchScalarGridSpec(
            num_scalar_prefetch=0,
            grid=(n_pad // tile_m, n_pad // tile_k),
            in_specs=[
                pl.BlockSpec((tile_m, tile_k), lambda i, k: (i, k)),  # A streams from HBM
                pl.BlockSpec((n_pad, c), lambda i, k: (0, 0)),        # XW resident in VMEM
                pl.BlockSpec((1, c), lambda i, k: (0, 0)),            # bias resident
            ],
            out_specs=pl.BlockSpec((tile_m, c), lambda i, k: (i, 0)),
            scratch_shapes=[pltpu.VMEM((tile_m, c), jnp.float32)],
        ),
        compiler_params=pltpu.CompilerParams(
            dimension_semantics=("parallel", "arbitrary"),
            vmem_limit_bytes=VMEM_LIMIT,
        ),
        cost_estimate=pl.CostEstimate(
            flops=2 * n_pad * n_pad * c,
            transcendentals=(n_pad * c if activation == "sigmoid" else 0),
            bytes_accessed=2 * n_pad * n_pad + 2 * n_pad * c + 4 * c
            + out_bytes * n_pad * c,
        ),
    )(a, xw, b)


# --------------------------------------------------------------------------- full model
def gcnet_forward(a_norm, x, w1, b1, w2, b2, *, tile_m=TILE_M, tile_k=TILE_K):
    n = x.shape[0]
    in_c, hid_c = w1.shape
    out_c = w2.shape[1]

    n_pad = _round_up(n, math.lcm(tile_m, tile_k))
    in_p = _round_up(in_c, LANE)
    hid_p = _round_up(hid_c, LANE)
    out_p = _round_up(out_c, LANE)

    def pad2(m, rows, cols):
        return jnp.zeros((rows, cols), m.dtype).at[: m.shape[0], : m.shape[1]].set(m)

    # bf16 operands (f32 accumulation inside the kernels); biases stay f32.
    a_p = pad2(a_norm, n_pad, n_pad).astype(jnp.bfloat16)
    x_p = pad2(x, n_pad, in_p).astype(jnp.bfloat16)
    w1_p = pad2(w1, in_p, hid_p).astype(jnp.bfloat16)
    b1_p = pad2(b1, 1, hid_p).astype(jnp.float32)
    w2_p = pad2(w2, hid_p, out_p).astype(jnp.bfloat16)
    b2_p = pad2(b2, 1, out_p).astype(jnp.float32)

    # ---- layer 1: GCNConv(in -> hidden) + ReLU ----
    xw1 = project(x_p, w1_p, tile_m=tile_m)
    h = gcn_aggregate(a_p, xw1, b1_p, activation="relu", out_dtype=jnp.bfloat16,
                      tile_m=tile_m, tile_k=tile_k)
    # dropout(training=False) -> identity (see TODO at top of file)

    # ---- layer 2: GCNConv(hidden -> out) + sigmoid ----
    hw2 = project(h, w2_p, tile_m=tile_m)
    out = gcn_aggregate(a_p, hw2, b2_p, activation="sigmoid", out_dtype=jnp.float32,
                        tile_m=tile_m, tile_k=tile_k)

    return out[:n, :out_c]


# --------------------------------------------------------------------------- glue
def build_normalized_adjacency(edge_index, num_nodes):
    """Dense GCN-normalized adjacency: D^{-1/2} (A + I) D^{-1/2}.

    edge_index: int32 [2, E], row 0 = source, row 1 = target (PyG convention).
    Duplicate edges are summed (matches PyG GCNConv behaviour).
    """
    src = edge_index[0]
    dst = edge_index[1]
    a = jnp.zeros((num_nodes, num_nodes), jnp.float32)
    a = a.at[dst, src].add(1.0)                      # A[i, j] += 1 for edge j -> i
    a_hat = a + jnp.eye(num_nodes, dtype=jnp.float32)
    deg = jnp.sum(a_hat, axis=1)
    dinv_sqrt = jnp.where(deg > 0, 1.0 / jnp.sqrt(deg), 0.0)
    return dinv_sqrt[:, None] * a_hat * dinv_sqrt[None, :]


def glorot(key, shape):
    fan_in, fan_out = shape
    limit = jnp.sqrt(6.0 / (fan_in + fan_out))
    return jax.random.uniform(key, shape, jnp.float32, -limit, limit)


if __name__ == "__main__":
    # Small, deterministic synthetic problem.
    num_nodes = 16
    in_channels = 4
    hidden_channels = 32
    out_channels = 8
    num_edges = 40

    key = jax.random.PRNGKey(0)
    k_x, k_e1, k_e2, k_w1, k_w2 = jax.random.split(key, 5)

    x = jax.random.normal(k_x, (num_nodes, in_channels), jnp.float32)
    src = jax.random.randint(k_e1, (num_edges,), 0, num_nodes, jnp.int32)
    dst = jax.random.randint(k_e2, (num_edges,), 0, num_nodes, jnp.int32)
    edge_index = jnp.stack([src, dst], axis=0)

    w1 = glorot(k_w1, (in_channels, hidden_channels))
    b1 = jnp.zeros((1, hidden_channels), jnp.float32)
    w2 = glorot(k_w2, (hidden_channels, out_channels))
    b2 = jnp.zeros((1, out_channels), jnp.float32)

    a_norm = build_normalized_adjacency(edge_index, num_nodes)

    fwd = jax.jit(gcnet_forward)
    out = jax.block_until_ready(fwd(a_norm, x, w1, b1, w2, b2))

    # Reference in plain f32 JAX (kernel uses bf16 operands -> loose tolerance).
    h_ref = jnp.maximum(a_norm @ (x @ w1) + b1, 0.0)
    o_ref = jax.nn.sigmoid(a_norm @ (h_ref @ w2) + b2)
    assert out.shape == (num_nodes, out_channels)
    assert jnp.allclose(out, o_ref, atol=2e-2), "mismatch vs JAX reference"

    print("KERNEL_OK")
</pallas_src>

<mosaic_0001>
module attributes {stable_mosaic.version = 11 : i64} {
  func.func @_project_kernel(%arg0: i32, %arg1: memref<256x128xbf16, #tpu.memory_space<vmem>>, %arg2: memref<128x128xbf16, #tpu.memory_space<vmem>>, %arg3: memref<256x128xbf16, #tpu.memory_space<vmem>>) attributes {dimension_semantics = [#tpu.dimension_semantics<parallel>], iteration_bounds = array<i64: 1>, scalar_prefetch = 0 : i64, scratch_operands = 0 : i64, tpu.core_type = #tpu.core_type<tc>, window_params = [{transform_indices = @transform_0, window_bounds = array<i64: 256, 128>}, {pipeline_mode = #tpu.pipeline_mode<synchronous>, transform_indices = @transform_1, window_bounds = array<i64: 128, 128>}, {transform_indices = @transform_2, window_bounds = array<i64: 256, 128>}]} {
    %c0 = arith.constant 0 : index
    %c0_0 = arith.constant 0 : index
    %0 = vector.load %arg1[%c0, %c0_0] : memref<256x128xbf16, #tpu.memory_space<vmem>>, vector<256x128xbf16>
    %c0_1 = arith.constant 0 : index
    %c0_2 = arith.constant 0 : index
    %1 = vector.load %arg2[%c0_1, %c0_2] : memref<128x128xbf16, #tpu.memory_space<vmem>>, vector<128x128xbf16>
    %cst = arith.constant dense<0.000000e+00> : vector<256x128xf32>
    %2 = tpu.matmul %0, %1, %cst {dimension_numbers = #tpu.dot_dimension_numbers<[1], [0], [0], [1], [0, 0, 1, 1], [], []>} : vector<256x128xbf16>, vector<128x128xbf16>, vector<256x128xf32> -> vector<256x128xf32>
    %3 = arith.truncf %2 : vector<256x128xf32> to vector<256x128xbf16>
    %c0_3 = arith.constant 0 : index
    %c0_4 = arith.constant 0 : index
    %4 = vector.load %arg3[%c0_3, %c0_4] : memref<256x128xbf16, #tpu.memory_space<vmem>>, vector<256x128xbf16>
    tpu.vector_store %arg3[%c0_3, %c0_4], %3 {strides = array<i32>} : memref<256x128xbf16, #tpu.memory_space<vmem>>, vector<256x128xbf16>,
    return
  }
  func.func @transform_0(%arg0: i32) -> (i32, i32) {
    %c0_i32 = arith.constant 0 : i32
    %c0_i32_0 = arith.constant 0 : i32
    return %arg0, %c0_i32 : i32, i32
  }
  func.func @transform_1(%arg0: i32) -> (i32, i32) {
    %c0_i32 = arith.constant 0 : i32
    %c0_i32_0 = arith.constant 0 : i32
    %c0_i32_1 = arith.constant 0 : i32
    return %c0_i32, %c0_i32_0 : i32, i32
  }
  func.func @transform_2(%arg0: i32) -> (i32, i32) {
    %c0_i32 = arith.constant 0 : i32
    %c0_i32_0 = arith.constant 0 : i32
    return %arg0, %c0_i32 : i32, i32
  }
}

module attributes {stable_mosaic.version = 11 : i64} {
  func.func @_aggregate_kernel(%arg0: i32, %arg1: i32, %arg2: memref<256x256xbf16, #tpu.memory_space<vmem>>, %arg3: memref<256x128xbf16, #tpu.memory_space<vmem>>, %arg4: memref<1x128xf32, #tpu.memory_space<vmem>>, %arg5: memref<256x128xbf16, #tpu.memory_space<vmem>>, %arg6: memref<256x128xf32, #tpu.memory_space<vmem>>) attributes {dimension_semantics = [#tpu.dimension_semantics<parallel>, #tpu.dimension_semantics<arbitrary>], iteration_bounds = array<i64: 1, 1>, scalar_prefetch = 0 : i64, scratch_operands = 1 : i64, tpu.core_type = #tpu.core_type<tc>, window_params = [{transform_indices = @transform_0, window_bounds = array<i64: 256, 256>}, {pipeline_mode = #tpu.pipeline_mode<synchronous>, transform_indices = @transform_1, window_bounds = array<i64: 256, 128>}, {pipeline_mode = #tpu.pipeline_mode<synchronous>, transform_indices = @transform_2, window_bounds = array<i64: 1, 128>}, {transform_indices = @transform_3, window_bounds = array<i64: 256, 128>}]} {
    %c0_i32 = arith.constant 0 : i32
    %0 = arith.cmpi eq, %arg1, %c0_i32 : i32
    %1 = arith.extui %0 : i1 to i32
    %c0_i32_0 = arith.constant 0 : i32
    %2 = arith.cmpi ne, %1, %c0_i32_0 : i32
    scf.if %2 {
      %cst_9 = arith.constant 0.000000e+00 : f32
      %15 = vector.broadcast %cst_9 : f32 to vector<256x128xf32>
      %c0_10 = arith.constant 0 : index
      %c0_11 = arith.constant 0 : index
      %16 = vector.load %arg6[%c0_10, %c0_11] : memref<256x128xf32, #tpu.memory_space<vmem>>, vector<256x128xf32>
      tpu.vector_store %arg6[%c0_10, %c0_11], %15 {strides = array<i32>} : memref<256x128xf32, #tpu.memory_space<vmem>>, vector<256x128xf32>,
    } else {
    }
    %c256_i32 = arith.constant 256 : i32
    %3 = arith.muli %arg1, %c256_i32 : i32
    %4 = tpu.assume_multiple %3, 256 : i32
    %5 = arith.index_cast %4 : i32 to index
    %c0 = arith.constant 0 : index
    %6 = vector.load %arg3[%5, %c0] : memref<256x128xbf16, #tpu.memory_space<vmem>>, vector<256x128xbf16>
    %c0_1 = arith.constant 0 : index
    %c0_2 = arith.constant 0 : index
    %7 = vector.load %arg6[%c0_1, %c0_2] : memref<256x128xf32, #tpu.memory_space<vmem>>, vector<256x128xf32>
    %c0_3 = arith.constant 0 : index
    %c0_4 = arith.constant 0 : index
    %8 = vector.load %arg2[%c0_3, %c0_4] : memref<256x256xbf16, #tpu.memory_space<vmem>>, vector<256x256xbf16>
    %cst = arith.constant dense<0.000000e+00> : vector<256x128xf32>
    %9 = tpu.matmul %8, %6, %cst {dimension_numbers = #tpu.dot_dimension_numbers<[1], [0], [0], [1], [0, 0, 1, 1], [], []>} : vector<256x256xbf16>, vector<256x128xbf16>, vector<256x128xf32> -> vector<256x128xf32>
    %10 = arith.addf %7, %9 : vector<256x128xf32>
    %c0_5 = arith.constant 0 : index
    %c0_6 = arith.constant 0 : index
    %11 = vector.load %arg6[%c0_5, %c0_6] : memref<256x128xf32, #tpu.memory_space<vmem>>, vector<256x128xf32>
    tpu.vector_store %arg6[%c0_5, %c0_6], %10 {strides = array<i32>} : memref<256x128xf32, #tpu.memory_space<vmem>>, vector<256x128xf32>,
    %c0_i32_7 = arith.constant 0 : i32
    %12 = arith.cmpi eq, %arg1, %c0_i32_7 : i32
    %13 = arith.extui %12 : i1 to i32
    %c0_i32_8 = arith.constant 0 : i32
    %14 = arith.cmpi ne, %13, %c0_i32_8 : i32
    scf.if %14 {
      %c0_9 = arith.constant 0 : index
      %c0_10 = arith.constant 0 : index
      %15 = vector.load %arg6[%c0_9, %c0_10] : memref<256x128xf32, #tpu.memory_space<vmem>>, vector<256x128xf32>
      %c0_11 = arith.constant 0 : index
      %c0_12 = arith.constant 0 : index
      %16 = vector.load %arg4[%c0_11, %c0_12] : memref<1x128xf32, #tpu.memory_space<vmem>>, vector<1x128xf32>
      %17 = vector.broadcast %16 : vector<1x128xf32> to vector<256x128xf32>
      %18 = arith.addf %15, %17 : vector<256x128xf32>
      %cst_13 = arith.constant 0.000000e+00 : f32
      %19 = vector.broadcast %cst_13 : f32 to vector<256x128xf32>
      %20 = arith.maximumf %18, %19 : vector<256x128xf32>
      %21 = arith.truncf %20 : vector<256x128xf32> to vector<256x128xbf16>
      %c0_14 = arith.constant 0 : index
      %c0_15 = arith.constant 0 : index
      %22 = vector.load %arg5[%c0_14, %c0_15] : memref<256x128xbf16, #tpu.memory_space<vmem>>, vector<256x128xbf16>
      tpu.vector_store %arg5[%c0_14, %c0_15], %21 {strides = array<i32>} : memref<256x128xbf16, #tpu.memory_space<vmem>>, vector<256x128xbf16>,
    } else {
    }
    return
  }
  func.func @transform_0(%arg0: i32, %arg1: i32) -> (i32, i32) {
    %c0_i32 = arith.constant 0 : i32
    return %arg0, %arg1 : i32, i32
  }
  func.func @transform_1(%arg0: i32, %arg1: i32) -> (i32, i32) {
    %c0_i32 = arith.constant 0 : i32
    %c0_i32_0 = arith.constant 0 : i32
    %c0_i32_1 = arith.constant 0 : i32
    return %c0_i32, %c0_i32_0 : i32, i32
  }
  func.func @transform_2(%arg0: i32, %arg1: i32) -> (i32, i32) {
    %c0_i32 = arith.constant 0 : i32
    %c0_i32_0 = arith.constant 0 : i32
    %c0_i32_1 = arith.constant 0 : i32
    return %c0_i32, %c0_i32_0 : i32, i32
  }
  func.func @transform_3(%arg0: i32, %arg1: i32) -> (i32, i32) {
    %c0_i32 = arith.constant 0 : i32
    %c0_i32_0 = arith.constant 0 : i32
    return %arg0, %c0_i32 : i32, i32
  }
}

module attributes {stable_mosaic.version = 11 : i64} {
  func.func @_aggregate_kernel(%arg0: i32, %arg1: i32, %arg2: memref<256x256xbf16, #tpu.memory_space<vmem>>, %arg3: memref<256x128xbf16, #tpu.memory_space<vmem>>, %arg4: memref<1x128xf32, #tpu.memory_space<vmem>>, %arg5: memref<256x128xf32, #tpu.memory_space<vmem>>, %arg6: memref<256x128xf32, #tpu.memory_space<vmem>>) attributes {dimension_semantics = [#tpu.dimension_semantics<parallel>, #tpu.dimension_semantics<arbitrary>], iteration_bounds = array<i64: 1, 1>, scalar_prefetch = 0 : i64, scratch_operands = 1 : i64, tpu.core_type = #tpu.core_type<tc>, window_params = [{transform_indices = @transform_0, window_bounds = array<i64: 256, 256>}, {pipeline_mode = #tpu.pipeline_mode<synchronous>, transform_indices = @transform_1, window_bounds = array<i64: 256, 128>}, {pipeline_mode = #tpu.pipeline_mode<synchronous>, transform_indices = @transform_2, window_bounds = array<i64: 1, 128>}, {transform_indices = @transform_3, window_bounds = array<i64: 256, 128>}]} {
    %c0_i32 = arith.constant 0 : i32
    %0 = arith.cmpi eq, %arg1, %c0_i32 : i32
    %1 = arith.extui %0 : i1 to i32
    %c0_i32_0 = arith.constant 0 : i32
    %2 = arith.cmpi ne, %1, %c0_i32_0 : i32
    scf.if %2 {
      %cst_9 = arith.constant 0.000000e+00 : f32
      %15 = vector.broadcast %cst_9 : f32 to vector<256x128xf32>
      %c0_10 = arith.constant 0 : index
      %c0_11 = arith.constant 0 : index
      %16 = vector.load %arg6[%c0_10, %c0_11] : memref<256x128xf32, #tpu.memory_space<vmem>>, vector<256x128xf32>
      tpu.vector_store %arg6[%c0_10, %c0_11], %15 {strides = array<i32>} : memref<256x128xf32, #tpu.memory_space<vmem>>, vector<256x128xf32>,
    } else {
    }
    %c256_i32 = arith.constant 256 : i32
    %3 = arith.muli %arg1, %c256_i32 : i32
    %4 = tpu.assume_multiple %3, 256 : i32
    %5 = arith.index_cast %4 : i32 to index
    %c0 = arith.constant 0 : index
    %6 = vector.load %arg3[%5, %c0] : memref<256x128xbf16, #tpu.memory_space<vmem>>, vector<256x128xbf16>
    %c0_1 = arith.constant 0 : index
    %c0_2 = arith.constant 0 : index
    %7 = vector.load %arg6[%c0_1, %c0_2] : memref<256x128xf32, #tpu.memory_space<vmem>>, vector<256x128xf32>
    %c0_3 = arith.constant 0 : index
    %c0_4 = arith.constant 0 : index
    %8 = vector.load %arg2[%c0_3, %c0_4] : memref<256x256xbf16, #tpu.memory_space<vmem>>, vector<256x256xbf16>
    %cst = arith.constant dense<0.000000e+00> : vector<256x128xf32>
    %9 = tpu.matmul %8, %6, %cst {dimension_numbers = #tpu.dot_dimension_numbers<[1], [0], [0], [1], [0, 0, 1, 1], [], []>} : vector<256x256xbf16>, vector<256x128xbf16>, vector<256x128xf32> -> vector<256x128xf32>
    %10 = arith.addf %7, %9 : vector<256x128xf32>
    %c0_5 = arith.constant 0 : index
    %c0_6 = arith.constant 0 : index
    %11 = vector.load %arg6[%c0_5, %c0_6] : memref<256x128xf32, #tpu.memory_space<vmem>>, vector<256x128xf32>
    tpu.vector_store %arg6[%c0_5, %c0_6], %10 {strides = array<i32>} : memref<256x128xf32, #tpu.memory_space<vmem>>, vector<256x128xf32>,
    %c0_i32_7 = arith.constant 0 : i32
    %12 = arith.cmpi eq, %arg1, %c0_i32_7 : i32
    %13 = arith.extui %12 : i1 to i32
    %c0_i32_8 = arith.constant 0 : i32
    %14 = arith.cmpi ne, %13, %c0_i32_8 : i32
    scf.if %14 {
      %c0_9 = arith.constant 0 : index
      %c0_10 = arith.constant 0 : index
      %15 = vector.load %arg6[%c0_9, %c0_10] : memref<256x128xf32, #tpu.memory_space<vmem>>, vector<256x128xf32>
      %c0_11 = arith.constant 0 : index
      %c0_12 = arith.constant 0 : index
      %16 = vector.load %arg4[%c0_11, %c0_12] : memref<1x128xf32, #tpu.memory_space<vmem>>, vector<1x128xf32>
      %17 = vector.broadcast %16 : vector<1x128xf32> to vector<256x128xf32>
      %18 = arith.addf %15, %17 : vector<256x128xf32>
      %cst_13 = arith.constant 0.000000e+00 : f32
      %19 = vector.broadcast %cst_13 : f32 to vector<256x128xf32>
      %20 = arith.subf %19, %18 : vector<256x128xf32>
      %21 = math.exp %20 : vector<256x128xf32>
      %cst_14 = arith.constant 1.000000e+00 : f32
      %22 = vector.broadcast %cst_14 : f32 to vector<256x128xf32>
      %23 = arith.addf %22, %21 : vector<256x128xf32>
      %24 = tpu.reciprocal %23 {approx = true} : vector<256x128xf32> -> vector<256x128xf32>
      %c0_15 = arith.constant 0 : index
      %c0_16 = arith.constant 0 : index
      %25 = vector.load %arg5[%c0_15, %c0_16] : memref<256x128xf32, #tpu.memory_space<vmem>>, vector<256x128xf32>
      tpu.vector_store %arg5[%c0_15, %c0_16], %24 {strides = array<i32>} : memref<256x128xf32, #tpu.memory_space<vmem>>, vector<256x128xf32>,
    } else {
    }
    return
  }
  func.func @transform_0(%arg0: i32, %arg1: i32) -> (i32, i32) {
    %c0_i32 = arith.constant 0 : i32
    return %arg0, %arg1 : i32, i32
  }
  func.func @transform_1(%arg0: i32, %arg1: i32) -> (i32, i32) {
    %c0_i32 = arith.constant 0 : i32
    %c0_i32_0 = arith.constant 0 : i32
    %c0_i32_1 = arith.constant 0 : i32
    return %c0_i32, %c0_i32_0 : i32, i32
  }
  func.func @transform_2(%arg0: i32, %arg1: i32) -> (i32, i32) {
    %c0_i32 = arith.constant 0 : i32
    %c0_i32_0 = arith.constant 0 : i32
    %c0_i32_1 = arith.constant 0 : i32
    return %c0_i32, %c0_i32_0 : i32, i32
  }
  func.func @transform_3(%arg0: i32, %arg1: i32) -> (i32, i32) {
    %c0_i32 = arith.constant 0 : i32
    %c0_i32_0 = arith.constant 0 : i32
    return %arg0, %c0_i32 : i32, i32
  }
}

</mosaic_0001>

<llo_original>
// kernel: gcnet_forward.4
$region0: #{gcnet_forward.4}
  #allocation0 [shape = 'u32[]', space=smem, size = 0x4, offset = 0x4, fixed_abs, tag = 'smem constant byte address 0x4 - core index']
  #allocation1 [shape = 'u32[144,128]{1,0:T(1,128)}', space=vmem, size = 0x12000, scoped, tag = 'internal scratch']
  %s0 = inlined_call_operand.vmem [shape: bf16[256,128], index: 0, kind: input, shape index: {}]
  %s1 = inlined_call_operand.vmem [shape: bf16[128,128], index: 1, kind: input, shape index: {}]
  %s2 = inlined_call_operand.vmem [shape: bf16[256,128], index: 2, kind: output, shape index: {}]
  %s3 = sld [smem:[#allocation0]]
  $region18: #{gcnet_forward.4} parent=0
    _
  %s5 = ssub.s32 1, %s3
  %s6 = scalar_select 0, %s5, %s3
  // Predicated region
  $region2: #{gcnet_forward.4} parent=0 // pred_check
    _
  $region3: #{gcnet_forward.4} parent=0 // pred_check_branch
    %8 = sbr.rel (0) target = $region5
  $region4: #{gcnet_forward.4} parent=0 // pred_region
    _
  $region5: #{gcnet_forward.4} parent=0 // pred_fallthru
    _
  // Predicated region
  $region6: #{gcnet_forward.4} parent=0 // pred_check
    _
  $region7: #{gcnet_forward.4} parent=0 // pred_check_branch
    %10 = sbr.rel (0) target = $region9
  $region8: #{gcnet_forward.4} parent=0 // pred_region
    _
  $region9: #{gcnet_forward.4} parent=0 // pred_fallthru
    _
  %v12 = vld [vmem:[%s0] sm:$0xf]
  %v13 = vld [vmem:[%s0 + $0x4] sm:$0xf]
  %v14 = vld [vmem:[%s0 + $0x8] sm:$0xf]
  %v15 = vld [vmem:[%s0 + $0xc] sm:$0xf]
  %v16 = vld [vmem:[%s0 + $0x10] sm:$0xf]
  %v17 = vld [vmem:[%s0 + $0x14] sm:$0xf]
  %v18 = vld [vmem:[%s0 + $0x18] sm:$0xf]
  %v19 = vld [vmem:[%s0 + $0x1c] sm:$0xf]
  %v20 = vld [vmem:[%s0 + $0x20] sm:$0xf]
  %v21 = vld [vmem:[%s0 + $0x24] sm:$0xf]
  %v22 = vld [vmem:[%s0 + $0x28] sm:$0xf]
  %v23 = vld [vmem:[%s0 + $0x2c] sm:$0xf]
  %v24 = vld [vmem:[%s0 + $0x30] sm:$0xf]
  %v25 = vld [vmem:[%s0 + $0x34] sm:$0xf]
  %v26 = vld [vmem:[%s0 + $0x38] sm:$0xf]
  %v27 = vld [vmem:[%s0 + $0x3c] sm:$0xf]
  %v28 = vld [vmem:[%s0 + $0x40] sm:$0xf]
  %v29 = vld [vmem:[%s0 + $0x44] sm:$0xf]
  %v30 = vld [vmem:[%s0 + $0x48] sm:$0xf]
  %v31 = vld [vmem:[%s0 + $0x4c] sm:$0xf]
  %v32 = vld [vmem:[%s0 + $0x50] sm:$0xf]
  %v33 = vld [vmem:[%s0 + $0x54] sm:$0xf]
  %v34 = vld [vmem:[%s0 + $0x58] sm:$0xf]
  %v35 = vld [vmem:[%s0 + $0x5c] sm:$0xf]
  %v36 = vld [vmem:[%s0 + $0x60] sm:$0xf]
  %v37 = vld [vmem:[%s0 + $0x64] sm:$0xf]
  %v38 = vld [vmem:[%s0 + $0x68] sm:$0xf]
  %v39 = vld [vmem:[%s0 + $0x6c] sm:$0xf]
  %v40 = vld [vmem:[%s0 + $0x70] sm:$0xf]
  %v41 = vld [vmem:[%s0 + $0x74] sm:$0xf]
  %v42 = vld [vmem:[%s0 + $0x78] sm:$0xf]
  %v43 = vld [vmem:[%s0 + $0x7c] sm:$0xf]
  %v44 = vld [vmem:[%s1] sm:$0xf]
  %v45 = vld [vmem:[%s1 + $0x4] sm:$0xf]
  %v46 = vld [vmem:[%s1 + $0x8] sm:$0xf]
  %v47 = vld [vmem:[%s1 + $0xc] sm:$0xf]
  %v48 = vld [vmem:[%s1 + $0x10] sm:$0xf]
  %v49 = vld [vmem:[%s1 + $0x14] sm:$0xf]
  %v50 = vld [vmem:[%s1 + $0x18] sm:$0xf]
  %v51 = vld [vmem:[%s1 + $0x1c] sm:$0xf]
  %v52 = vld [vmem:[%s1 + $0x20] sm:$0xf]
  %v53 = vld [vmem:[%s1 + $0x24] sm:$0xf]
  %v54 = vld [vmem:[%s1 + $0x28] sm:$0xf]
  %v55 = vld [vmem:[%s1 + $0x2c] sm:$0xf]
  %v56 = vld [vmem:[%s1 + $0x30] sm:$0xf]
  %v57 = vld [vmem:[%s1 + $0x34] sm:$0xf]
  %v58 = vld [vmem:[%s1 + $0x38] sm:$0xf]
  %v59 = vld [vmem:[%s1 + $0x3c] sm:$0xf]
  %v92 = vunpack.c.l.b16 %v12
  %v93 = vunpack.c.l.b16 %v13
  %v94 = vunpack.c.l.b16 %v14
  %v95 = vunpack.c.l.b16 %v15
  %v96 = vunpack.c.l.b16 %v16
  %v97 = vunpack.c.l.b16 %v17
  %v98 = vunpack.c.l.b16 %v18
  %v99 = vunpack.c.l.b16 %v19
  %v100 = vunpack.c.l.b16 %v20
  %v101 = vunpack.c.l.b16 %v21
  %v102 = vunpack.c.l.b16 %v22
  %v103 = vunpack.c.l.b16 %v23
  %v104 = vunpack.c.l.b16 %v24
  %v105 = vunpack.c.l.b16 %v25
  %v106 = vunpack.c.l.b16 %v26
  %v107 = vunpack.c.l.b16 %v27
  %v108 = vunpack.c.l.b16 %v28
  %v109 = vunpack.c.l.b16 %v29
  %v110 = vunpack.c.l.b16 %v30
  %v111 = vunpack.c.l.b16 %v31
  %v112 = vunpack.c.l.b16 %v32
  %v113 = vunpack.c.l.b16 %v33
  %v114 = vunpack.c.l.b16 %v34
  %v115 = vunpack.c.l.b16 %v35
  %v116 = vunpack.c.l.b16 %v36
  %v117 = vunpack.c.l.b16 %v37
  %v118 = vunpack.c.l.b16 %v38
  %v119 = vunpack.c.l.b16 %v39
  %v120 = vunpack.c.l.b16 %v40
  %v121 = vunpack.c.l.b16 %v41
  %v122 = vunpack.c.l.b16 %v42
  %v123 = vunpack.c.l.b16 %v43
  %v124 = vpack.c.b16 %v93, %v92
  %v125 = vpack.c.b16 %v95, %v94
  %v126 = vpack.c.b16 %v97, %v96
  %v127 = vpack.c.b16 %v99, %v98
  %v128 = vpack.c.b16 %v101, %v100
  %v129 = vpack.c.b16 %v103, %v102
  %v130 = vpack.c.b16 %v105, %v104
  %v131 = vpack.c.b16 %v107, %v106
  %v132 = vpack.c.b16 %v109, %v108
  %v133 = vpack.c.b16 %v111, %v110
  %v134 = vpack.c.b16 %v113, %v112
  %v135 = vpack.c.b16 %v115, %v114
  %v136 = vpack.c.b16 %v117, %v116
  %v137 = vpack.c.b16 %v119, %v118
  %v138 = vpack.c.b16 %v121, %v120
  %v139 = vpack.c.b16 %v123, %v122
  %v172 = vunpack.c.l.b16 %v44
  %v173 = vunpack.c.l.b16 %v45
  %v174 = vunpack.c.l.b16 %v46
  %v175 = vunpack.c.l.b16 %v47
  %v176 = vunpack.c.l.b16 %v48
  %v177 = vunpack.c.l.b16 %v49
  %v178 = vunpack.c.l.b16 %v50
  %v179 = vunpack.c.l.b16 %v51
  %v180 = vunpack.c.l.b16 %v52
  %v181 = vunpack.c.l.b16 %v53
  %v182 = vunpack.c.l.b16 %v54
  %v183 = vunpack.c.l.b16 %v55
  %v184 = vunpack.c.l.b16 %v56
  %v185 = vunpack.c.l.b16 %v57
  %v186 = vunpack.c.l.b16 %v58
  %v187 = vunpack.c.l.b16 %v59
  %v188 = vpack.c.b16 %v173, %v172
  %v189 = vpack.c.b16 %v175, %v174
  %v190 = vpack.c.b16 %v177, %v176
  %v191 = vpack.c.b16 %v179, %v178
  %v192 = vpack.c.b16 %v181, %v180
  %v193 = vpack.c.b16 %v183, %v182
  %v194 = vpack.c.b16 %v185, %v184
  %v195 = vpack.c.b16 %v187, %v186
  %204 = vmatprep.subr.bf16.mxu0 0
  %205 = vmatpush1.bf16.msra.mxu0 %v188
  %206 = vmatprep.subr.bf16.mxu0 0
  %207 = vmatpush1.bf16.msra.mxu0 %v189
  %208 = vmatprep.subr.bf16.mxu0 0
  %209 = vmatpush1.bf16.msra.mxu0 %v190
  %210 = vmatprep.subr.bf16.mxu0 0
  %211 = vmatpush1.bf16.msra.mxu0 %v191
  %212 = vmatprep.subr.bf16.mxu0 0
  %213 = vmatpush1.bf16.msra.mxu0 %v192
  %214 = vmatprep.subr.bf16.mxu0 0
  %215 = vmatpush1.bf16.msra.mxu0 %v193
  %216 = vmatprep.subr.bf16.mxu0 0
  %217 = vmatpush1.bf16.msra.mxu0 %v194
  %218 = vmatprep.subr.bf16.mxu0 0
  %219 = vmatpush1.bf16.msra.mxu0 %v195
  %220 = vmatprep.subr.bf16.mxu0 0
  %221 = vmatpush1.bf16.msra.mxu0 0
  %222 = vmatprep.subr.bf16.mxu0 0
  %223 = vmatpush1.bf16.msra.mxu0 0
  %224 = vmatprep.subr.bf16.mxu0 0
  %225 = vmatpush1.bf16.msra.mxu0 0
  %226 = vmatprep.subr.bf16.mxu0 0
  %227 = vmatpush1.bf16.msra.mxu0 0
  %228 = vmatprep.subr.bf16.mxu0 0
  %229 = vmatpush1.bf16.msra.mxu0 0
  %230 = vmatprep.subr.bf16.mxu0 0
  %231 = vmatpush1.bf16.msra.mxu0 0
  %232 = vmatprep.subr.bf16.mxu0 0
  %233 = vmatpush1.bf16.msra.mxu0 0
  %234 = vmatprep.subr.bf16.mxu0 0
  %235 = vmatpush1.bf16.msra.mxu0 0
  %236 = vmatprep.mubr.bf16.mxu0 0
  %237 = vmatmul.mubr.bf16.gmra.mrb[0].mxu0 %v124
  %v238 = vpop.f32.mrb[0].mxu0
  %v239 = vadd.f32 0.0, %v238
  %v240 = vpop.f32.mrb[0].mxu0
  %v241 = vpop.f32.mrb[0].mxu0
  %v242 = vadd.f32 0.0, %v241
  %v243 = vpop.f32.mrb[0].mxu0
  %244 = vmatprep.mubr.bf16.mxu0 0
  %245 = vmatmul.mubr.bf16.gmra.mrb[0].mxu0 %v125
  %v246 = vpop.f32.mrb[0].mxu0
  %v247 = vadd.f32 0.0, %v246
  %v248 = vpop.f32.mrb[0].mxu0
  %v249 = vpop.f32.mrb[0].mxu0
  %v250 = vadd.f32 0.0, %v249
  %v251 = vpop.f32.mrb[0].mxu0
  %252 = vmatprep.mubr.bf16.mxu0 0
  %253 = vmatmul.mubr.bf16.gmra.mrb[0].mxu0 %v126
  %v254 = vpop.f32.mrb[0].mxu0
  %v255 = vadd.f32 0.0, %v254
  %v256 = vpop.f32.mrb[0].mxu0
  %v257 = vpop.f32.mrb[0].mxu0
  %v258 = vadd.f32 0.0, %v257
  %v259 = vpop.f32.mrb[0].mxu0
  %260 = vmatprep.mubr.bf16.mxu0 0
  %261 = vmatmul.mubr.bf16.gmra.mrb[0].mxu0 %v127
  %v262 = vpop.f32.mrb[0].mxu0
  %v263 = vadd.f32 0.0, %v262
  %v264 = vpop.f32.mrb[0].mxu0
  %v265 = vpop.f32.mrb[0].mxu0
  %v266 = vadd.f32 0.0, %v265
  %v267 = vpop.f32.mrb[0].mxu0
  %268 = vmatprep.mubr.bf16.mxu0 0
  %269 = vmatmul.mubr.bf16.gmra.mrb[0].mxu0 %v128
  %v270 = vpop.f32.mrb[0].mxu0
  %v271 = vadd.f32 0.0, %v270
  %v272 = vpop.f32.mrb[0].mxu0
  %v273 = vpop.f32.mrb[0].mxu0
  %v274 = vadd.f32 0.0, %v273
  %v275 = vpop.f32.mrb[0].mxu0
  %276 = vmatprep.mubr.bf16.mxu0 0
  %277 = vmatmul.mubr.bf16.gmra.mrb[0].mxu0 %v129
  %v278 = vpop.f32.mrb[0].mxu0
  %v279 = vadd.f32 0.0, %v278
  %v280 = vpop.f32.mrb[0].mxu0
  %v281 = vpop.f32.mrb[0].mxu0
  %v282 = vadd.f32 0.0, %v281
  %v283 = vpop.f32.mrb[0].mxu0
  %284 = vmatprep.mubr.bf16.mxu0 0
  %285 = vmatmul.mubr.bf16.gmra.mrb[0].mxu0 %v130
  %v286 = vpop.f32.mrb[0].mxu0
  %v287 = vadd.f32 0.0, %v286
  %v288 = vpop.f32.mrb[0].mxu0
  %v289 = vpop.f32.mrb[0].mxu0
  %v290 = vadd.f32 0.0, %v289
  %v291 = vpop.f32.mrb[0].mxu0
  %292 = vmatprep.mubr.bf16.mxu0 0
  %293 = vmatmul.mubr.bf16.gmra.mrb[0].mxu0 %v131
  %v294 = vpop.f32.mrb[0].mxu0
  %v295 = vadd.f32 0.0, %v294
  %v296 = vpop.f32.mrb[0].mxu0
  %v297 = vpop.f32.mrb[0].mxu0
  %v298 = vadd.f32 0.0, %v297
  %v299 = vpop.f32.mrb[0].mxu0
  %300 = vmatprep.mubr.bf16.mxu0 0
  %301 = vmatmul.mubr.bf16.gmra.mrb[0].mxu0 %v132
  %v302 = vpop.f32.mrb[0].mxu0
  %v303 = vadd.f32 0.0, %v302
  %v304 = vpop.f32.mrb[0].mxu0
  %v305 = vpop.f32.mrb[0].mxu0
  %v306 = vadd.f32 0.0, %v305
  %v307 = vpop.f32.mrb[0].mxu0
  %308 = vmatprep.mubr.bf16.mxu0 0
  %309 = vmatmul.mubr.bf16.gmra.mrb[0].mxu0 %v133
  %v310 = vpop.f32.mrb[0].mxu0
  %v311 = vadd.f32 0.0, %v310
  %v312 = vpop.f32.mrb[0].mxu0
  %v313 = vpop.f32.mrb[0].mxu0
  %v314 = vadd.f32 0.0, %v313
  %v315 = vpop.f32.mrb[0].mxu0
  %316 = vmatprep.mubr.bf16.mxu0 0
  %317 = vmatmul.mubr.bf16.gmra.mrb[0].mxu0 %v134
  %v318 = vpop.f32.mrb[0].mxu0
  %v319 = vadd.f32 0.0, %v318
  %v320 = vpop.f32.mrb[0].mxu0
  %v321 = vpop.f32.mrb[0].mxu0
  %v322 = vadd.f32 0.0, %v321
  %v323 = vpop.f32.mrb[0].mxu0
  %324 = vmatprep.mubr.bf16.mxu0 0
  %325 = vmatmul.mubr.bf16.gmra.mrb[0].mxu0 %v135
  %v326 = vpop.f32.mrb[0].mxu0
  %v327 = vadd.f32 0.0, %v326
  %v328 = vpop.f32.mrb[0].mxu0
  %v329 = vpop.f32.mrb[0].mxu0
  %v330 = vadd.f32 0.0, %v329
  %v331 = vpop.f32.mrb[0].mxu0
  %332 = vmatprep.mubr.bf16.mxu0 0
  %333 = vmatmul.mubr.bf16.gmra.mrb[0].mxu0 %v136
  %v334 = vpop.f32.mrb[0].mxu0
  %v335 = vadd.f32 0.0, %v334
  %v336 = vpop.f32.mrb[0].mxu0
  %v337 = vpop.f32.mrb[0].mxu0
  %v338 = vadd.f32 0.0, %v337
  %v339 = vpop.f32.mrb[0].mxu0
  %340 = vmatprep.mubr.bf16.mxu0 0
  %341 = vmatmul.mubr.bf16.gmra.mrb[0].mxu0 %v137
  %v342 = vpop.f32.mrb[0].mxu0
  %v343 = vadd.f32 0.0, %v342
  %v344 = vpop.f32.mrb[0].mxu0
  %v345 = vpop.f32.mrb[0].mxu0
  %v346 = vadd.f32 0.0, %v345
  %v347 = vpop.f32.mrb[0].mxu0
  %348 = vmatprep.mubr.bf16.mxu0 0
  %349 = vmatmul.mubr.bf16.gmra.mrb[0].mxu0 %v138
  %v350 = vpop.f32.mrb[0].mxu0
  %v351 = vadd.f32 0.0, %v350
  %v352 = vpop.f32.mrb[0].mxu0
  %v353 = vpop.f32.mrb[0].mxu0
  %v354 = vadd.f32 0.0, %v353
  %v355 = vpop.f32.mrb[0].mxu0
  %356 = vmatprep.mubr.bf16.mxu0 0
  %357 = vmatmul.mubr.bf16.gmra.mrb[0].mxu0 %v139
  %v358 = vpop.f32.mrb[0].mxu0
  %v359 = vadd.f32 0.0, %v358
  %v360 = vpop.f32.mrb[0].mxu0
  %v361 = vpop.f32.mrb[0].mxu0
  %v362 = vadd.f32 0.0, %v361
  %v363 = vpop.f32.mrb[0].mxu0
  %364 = vdwg.mxu0
  %v365 = vpack.c.bf16 %v242, %v239
  %v366 = vpack.c.bf16 %v250, %v247
  %v367 = vpack.c.bf16 %v258, %v255
  %v368 = vpack.c.bf16 %v266, %v263
  %v369 = vpack.c.bf16 %v274, %v271
  %v370 = vpack.c.bf16 %v282, %v279
  %v371 = vpack.c.bf16 %v290, %v287
  %v372 = vpack.c.bf16 %v298, %v295
  %v373 = vpack.c.bf16 %v306, %v303
  %v374 = vpack.c.bf16 %v314, %v311
  %v375 = vpack.c.bf16 %v322, %v319
  %v376 = vpack.c.bf16 %v330, %v327
  %v377 = vpack.c.bf16 %v338, %v335
  %v378 = vpack.c.bf16 %v346, %v343
  %v379 = vpack.c.bf16 %v354, %v351
  %v380 = vpack.c.bf16 %v362, %v359
  %v397 = vunpack.c.l.b16 %v365
  %v398 = vunpack.c.h.b16 %v365
  %v399 = vunpack.c.l.b16 %v366
  %v400 = vunpack.c.h.b16 %v366
  %v401 = vunpack.c.l.b16 %v367
  %v402 = vunpack.c.h.b16 %v367
  %v403 = vunpack.c.l.b16 %v368
  %v404 = vunpack.c.h.b16 %v368
  %v405 = vunpack.c.l.b16 %v369
  %v406 = vunpack.c.h.b16 %v369
  %v407 = vunpack.c.l.b16 %v370
  %v408 = vunpack.c.h.b16 %v370
  %v409 = vunpack.c.l.b16 %v371
  %v410 = vunpack.c.h.b16 %v371
  %v411 = vunpack.c.l.b16 %v372
  %v412 = vunpack.c.h.b16 %v372
  %v413 = vunpack.c.l.b16 %v373
  %v414 = vunpack.c.h.b16 %v373
  %v415 = vunpack.c.l.b16 %v374
  %v416 = vunpack.c.h.b16 %v374
  %v417 = vunpack.c.l.b16 %v375
  %v418 = vunpack.c.h.b16 %v375
  %v419 = vunpack.c.l.b16 %v376
  %v420 = vunpack.c.h.b16 %v376
  %v421 = vunpack.c.l.b16 %v377
  %v422 = vunpack.c.h.b16 %v377
  %v423 = vunpack.c.l.b16 %v378
  %v424 = vunpack.c.h.b16 %v378
  %v425 = vunpack.c.l.b16 %v379
  %v426 = vunpack.c.h.b16 %v379
  %v427 = vunpack.c.l.b16 %v380
  %v428 = vunpack.c.h.b16 %v380
  %v429 = vpack.c.b16 %v397, %v397
  %v430 = vpack.c.b16 %v398, %v398
  %v431 = vpack.c.b16 %v399, %v399
  %v432 = vpack.c.b16 %v400, %v400
  %v433 = vpack.c.b16 %v401, %v401
  %v434 = vpack.c.b16 %v402, %v402
  %v435 = vpack.c.b16 %v403, %v403
  %v436 = vpack.c.b16 %v404, %v404
  %v437 = vpack.c.b16 %v405, %v405
  %v438 = vpack.c.b16 %v406, %v406
  %v439 = vpack.c.b16 %v407, %v407
  %v440 = vpack.c.b16 %v408, %v408
  %v441 = vpack.c.b16 %v409, %v409
  %v442 = vpack.c.b16 %v410, %v410
  %v443 = vpack.c.b16 %v411, %v411
  %v444 = vpack.c.b16 %v412, %v412
  %v445 = vpack.c.b16 %v413, %v413
  %v446 = vpack.c.b16 %v414, %v414
  %v447 = vpack.c.b16 %v415, %v415
  %v448 = vpack.c.b16 %v416, %v416
  %v449 = vpack.c.b16 %v417, %v417
  %v450 = vpack.c.b16 %v418, %v418
  %v451 = vpack.c.b16 %v419, %v419
  %v452 = vpack.c.b16 %v420, %v420
  %v453 = vpack.c.b16 %v421, %v421
  %v454 = vpack.c.b16 %v422, %v422
  %v455 = vpack.c.b16 %v423, %v423
  %v456 = vpack.c.b16 %v424, %v424
  %v457 = vpack.c.b16 %v425, %v425
  %v458 = vpack.c.b16 %v426, %v426
  %v459 = vpack.c.b16 %v427, %v427
  %v460 = vpack.c.b16 %v428, %v428
  %493 = vst [vmem:[%s2] sm:$0xf] %v429
  %494 = vst [vmem:[%s2 + $0x4] sm:$0xf] %v430
  %495 = vst [vmem:[%s2 + $0x8] sm:$0xf] %v431
  %496 = vst [vmem:[%s2 + $0xc] sm:$0xf] %v432
  %497 = vst [vmem:[%s2 + $0x10] sm:$0xf] %v433
  %498 = vst [vmem:[%s2 + $0x14] sm:$0xf] %v434
  %499 = vst [vmem:[%s2 + $0x18] sm:$0xf] %v435
  %500 = vst [vmem:[%s2 + $0x1c] sm:$0xf] %v436
  %501 = vst [vmem:[%s2 + $0x20] sm:$0xf] %v437
  %502 = vst [vmem:[%s2 + $0x24] sm:$0xf] %v438
  %503 = vst [vmem:[%s2 + $0x28] sm:$0xf] %v439
  %504 = vst [vmem:[%s2 + $0x2c] sm:$0xf] %v440
  %505 = vst [vmem:[%s2 + $0x30] sm:$0xf] %v441
  %506 = vst [vmem:[%s2 + $0x34] sm:$0xf] %v442
  %507 = vst [vmem:[%s2 + $0x38] sm:$0xf] %v443
  %508 = vst [vmem:[%s2 + $0x3c] sm:$0xf] %v444
  %509 = vst [vmem:[%s2 + $0x40] sm:$0xf] %v445
  %510 = vst [vmem:[%s2 + $0x44] sm:$0xf] %v446
  %511 = vst [vmem:[%s2 + $0x48] sm:$0xf] %v447
  %512 = vst [vmem:[%s2 + $0x4c] sm:$0xf] %v448
  %513 = vst [vmem:[%s2 + $0x50] sm:$0xf] %v449
  %514 = vst [vmem:[%s2 + $0x54] sm:$0xf] %v450
  %515 = vst [vmem:[%s2 + $0x58] sm:$0xf] %v451
  %516 = vst [vmem:[%s2 + $0x5c] sm:$0xf] %v452
  %517 = vst [vmem:[%s2 + $0x60] sm:$0xf] %v453
  %518 = vst [vmem:[%s2 + $0x64] sm:$0xf] %v454
  %519 = vst [vmem:[%s2 + $0x68] sm:$0xf] %v455
  %520 = vst [vmem:[%s2 + $0x6c] sm:$0xf] %v456
  %521 = vst [vmem:[%s2 + $0x70] sm:$0xf] %v457
  %522 = vst [vmem:[%s2 + $0x74] sm:$0xf] %v458
  %523 = vst [vmem:[%s2 + $0x78] sm:$0xf] %v459
  %524 = vst [vmem:[%s2 + $0x7c] sm:$0xf] %v460
  // Predicated region
  $region10: #{gcnet_forward.4} parent=0 // pred_check
    _
  $region11: #{gcnet_forward.4} parent=0 // pred_check_branch
    %526 = sbr.rel (0) target = $region13
  $region12: #{gcnet_forward.4} parent=0 // pred_region
    _
  $region13: #{gcnet_forward.4} parent=0 // pred_fallthru
    _
  // Predicated region
  $region14: #{gcnet_forward.4} parent=0 // pred_check
    _
  $region15: #{gcnet_forward.4} parent=0 // pred_check_branch
    %528 = sbr.rel (0) target = $region17
  $region16: #{gcnet_forward.4} parent=0 // pred_region
    _
  $region17: #{gcnet_forward.4} parent=0 // pred_fallthru
    _

// kernel: gcnet_forward.7
$region0: #{gcnet_forward.7}
  #allocation0 [shape = 'u32[]', space=smem, size = 0x4, offset = 0x4, fixed_abs, tag = 'smem constant byte address 0x4 - core index']
  #allocation1 [shape = 'u32[144,128]{1,0:T(1,128)}', space=vmem, size = 0x12000, scoped, tag = 'internal scratch']
  #allocation2 [shape = 'f32[256,128]{1,0:T(8,128)}', space=vmem, size = 0x20000, scoped, tag = 'scratch operand']
  %s0 = inlined_call_operand.vmem [shape: bf16[256,256], index: 0, kind: input, shape index: {}]
  %s1 = inlined_call_operand.vmem [shape: bf16[256,128], index: 1, kind: input, shape index: {}]
  %s2 = inlined_call_operand.vmem [shape: f32[1,128], index: 2, kind: input, shape index: {}]
  %s3 = inlined_call_operand.vmem [shape: f32[256,128], index: 3, kind: output, shape index: {}]
  %s4 = sld [smem:[#allocation0]]
  $region30: #{gcnet_forward.7} parent=0
    _
  %s6 = ssub.s32 1, %s4
  %s7 = scalar_select 0, %s6, %s4
  // Predicated region
  $region2: #{gcnet_forward.7} parent=0 // pred_check
    _
  $region3: #{gcnet_forward.7} parent=0 // pred_check_branch
    %9 = sbr.rel (0) target = $region5
  $region4: #{gcnet_forward.7} parent=0 // pred_region
    _
  $region5: #{gcnet_forward.7} parent=0 // pred_fallthru
    _
  // Predicated region
  $region6: #{gcnet_forward.7} parent=0 // pred_check
    _
  $region7: #{gcnet_forward.7} parent=0 // pred_check_branch
    %11 = sbr.rel (0) target = $region9
  $region8: #{gcnet_forward.7} parent=0 // pred_region
    _
  $region9: #{gcnet_forward.7} parent=0 // pred_fallthru
    _
  // Predicated region
  $region10: #{gcnet_forward.7} parent=0 // pred_check
    _
  $region11: #{gcnet_forward.7} parent=0 // pred_check_branch
    %13 = sbr.rel (0) target = $region13
  $region12: #{gcnet_forward.7} parent=0 // pred_region
    _
  $region13: #{gcnet_forward.7} parent=0 // pred_fallthru
    _
  %p15 = scmp.eq.s32.totalorder 0, 0
  // Predicated region
  $region14: #{gcnet_forward.7} parent=0 // pred_check
    %p16 = pneg %p15
  $region15: #{gcnet_forward.7} parent=0 // pred_check_branch
    %18 = sbr.rel (%p16) target = $region17
  $region16: #{gcnet_forward.7} parent=0 // pred_region
    %19 = vst [vmem:[#allocation2] sm:$0xff] 0.0
    %20 = vst [vmem:[#allocation2 + $0x8] sm:$0xff] 0.0
    %21 = vst [vmem:[#allocation2 + $0x10] sm:$0xff] 0.0
    %22 = vst [vmem:[#allocation2 + $0x18] sm:$0xff] 0.0
    %23 = vst [vmem:[#allocation2 + $0x20] sm:$0xff] 0.0
    %24 = vst [vmem:[#allocation2 + $0x28] sm:$0xff] 0.0
    %25 = vst [vmem:[#allocation2 + $0x30] sm:$0xff] 0.0
    %26 = vst [vmem:[#allocation2 + $0x38] sm:$0xff] 0.0
    %27 = vst [vmem:[#allocation2 + $0x40] sm:$0xff] 0.0
    %28 = vst [vmem:[#allocation2 + $0x48] sm:$0xff] 0.0
    %29 = vst [vmem:[#allocation2 + $0x50] sm:$0xff] 0.0
    %30 = vst [vmem:[#allocation2 + $0x58] sm:$0xff] 0.0
    %31 = vst [vmem:[#allocation2 + $0x60] sm:$0xff] 0.0
    %32 = vst [vmem:[#allocation2 + $0x68] sm:$0xff] 0.0
    %33 = vst [vmem:[#allocation2 + $0x70] sm:$0xff] 0.0
    %34 = vst [vmem:[#allocation2 + $0x78] sm:$0xff] 0.0
    %35 = vst [vmem:[#allocation2 + $0x80] sm:$0xff] 0.0
    %36 = vst [vmem:[#allocation2 + $0x88] sm:$0xff] 0.0
    %37 = vst [vmem:[#allocation2 + $0x90] sm:$0xff] 0.0
    %38 = vst [vmem:[#allocation2 + $0x98] sm:$0xff] 0.0
    %39 = vst [vmem:[#allocation2 + $0xa0] sm:$0xff] 0.0
    %40 = vst [vmem:[#allocation2 + $0xa8] sm:$0xff] 0.0
    %41 = vst [vmem:[#allocation2 + $0xb0] sm:$0xff] 0.0
    %42 = vst [vmem:[#allocation2 + $0xb8] sm:$0xff] 0.0
    %43 = vst [vmem:[#allocation2 + $0xc0] sm:$0xff] 0.0
    %44 = vst [vmem:[#allocation2 + $0xc8] sm:$0xff] 0.0
    %45 = vst [vmem:[#allocation2 + $0xd0] sm:$0xff] 0.0
    %46 = vst [vmem:[#allocation2 + $0xd8] sm:$0xff] 0.0
    %47 = vst [vmem:[#allocation2 + $0xe0] sm:$0xff] 0.0
    %48 = vst [vmem:[#allocation2 + $0xe8] sm:$0xff] 0.0
    %49 = vst [vmem:[#allocation2 + $0xf0] sm:$0xff] 0.0
    %50 = vst [vmem:[#allocation2 + $0xf8] sm:$0xff] 0.0
  $region17: #{gcnet_forward.7} parent=0 // pred_fallthru
    _
  %s51 = smul.u32 0, 256
  %s52 = sshra.s32 %s51, 3
  %s53 = sand.u32 %s51, 7
  %s54 = smul.addr %s52, 4
  %s55 = scalar_lea.vmem %s1, %s54
  %v56 = vld [vmem:[%s55] sm:$0xf]
  %v57 = vld [vmem:[%s55 + $0x4] sm:$0xf]
  %v58 = vld [vmem:[%s55 + $0x8] sm:$0xf]
  %v59 = vld [vmem:[%s55 + $0xc] sm:$0xf]
  %v60 = vld [vmem:[%s55 + $0x10] sm:$0xf]
  %v61 = vld [vmem:[%s55 + $0x14] sm:$0xf]
  %v62 = vld [vmem:[%s55 + $0x18] sm:$0xf]
  %v63 = vld [vmem:[%s55 + $0x1c] sm:$0xf]
  %v64 = vld [vmem:[%s55 + $0x20] sm:$0xf]
  %v65 = vld [vmem:[%s55 + $0x24] sm:$0xf]
  %v66 = vld [vmem:[%s55 + $0x28] sm:$0xf]
  %v67 = vld [vmem:[%s55 + $0x2c] sm:$0xf]
  %v68 = vld [vmem:[%s55 + $0x30] sm:$0xf]
  %v69 = vld [vmem:[%s55 + $0x34] sm:$0xf]
  %v70 = vld [vmem:[%s55 + $0x38] sm:$0xf]
  %v71 = vld [vmem:[%s55 + $0x3c] sm:$0xf]
  %v72 = vld [vmem:[%s55 + $0x40] sm:$0xf]
  %v73 = vld [vmem:[%s55 + $0x44] sm:$0xf]
  %v74 = vld [vmem:[%s55 + $0x48] sm:$0xf]
  %v75 = vld [vmem:[%s55 + $0x4c] sm:$0xf]
  %v76 = vld [vmem:[%s55 + $0x50] sm:$0xf]
  %v77 = vld [vmem:[%s55 + $0x54] sm:$0xf]
  %v78 = vld [vmem:[%s55 + $0x58] sm:$0xf]
  %v79 = vld [vmem:[%s55 + $0x5c] sm:$0xf]
  %v80 = vld [vmem:[%s55 + $0x60] sm:$0xf]
  %v81 = vld [vmem:[%s55 + $0x64] sm:$0xf]
  %v82 = vld [vmem:[%s55 + $0x68] sm:$0xf]
  %v83 = vld [vmem:[%s55 + $0x6c] sm:$0xf]
  %v84 = vld [vmem:[%s55 + $0x70] sm:$0xf]
  %v85 = vld [vmem:[%s55 + $0x74] sm:$0xf]
  %v86 = vld [vmem:[%s55 + $0x78] sm:$0xf]
  %v87 = vld [vmem:[%s55 + $0x7c] sm:$0xf]
  %v88 = vld [vmem:[#allocation2] sm:$0xff]
  %v89 = vld [vmem:[#allocation2 + $0x8] sm:$0xff]
  %v90 = vld [vmem:[#allocation2 + $0x10] sm:$0xff]
  %v91 = vld [vmem:[#allocation2 + $0x18] sm:$0xff]
  %v92 = vld [vmem:[#allocation2 + $0x20] sm:$0xff]
  %v93 = vld [vmem:[#allocation2 + $0x28] sm:$0xff]
  %v94 = vld [vmem:[#allocation2 + $0x30] sm:$0xff]
  %v95 = vld [vmem:[#allocation2 + $0x38] sm:$0xff]
  %v96 = vld [vmem:[#allocation2 + $0x40] sm:$0xff]
  %v97 = vld [vmem:[#allocation2 + $0x48] sm:$0xff]
  %v98 = vld [vmem:[#allocation2 + $0x50] sm:$0xff]
  %v99 = vld [vmem:[#allocation2 + $0x58] sm:$0xff]
  %v100 = vld [vmem:[#allocation2 + $0x60] sm:$0xff]
  %v101 = vld [vmem:[#allocation2 + $0x68] sm:$0xff]
  %v102 = vld [vmem:[#allocation2 + $0x70] sm:$0xff]
  %v103 = vld [vmem:[#allocation2 + $0x78] sm:$0xff]
  %v104 = vld [vmem:[#allocation2 + $0x80] sm:$0xff]
  %v105 = vld [vmem:[#allocation2 + $0x88] sm:$0xff]
  %v106 = vld [vmem:[#allocation2 + $0x90] sm:$0xff]
  %v107 = vld [vmem:[#allocation2 + $0x98] sm:$0xff]
  %v108 = vld [vmem:[#allocation2 + $0xa0] sm:$0xff]
  %v109 = vld [vmem:[#allocation2 + $0xa8] sm:$0xff]
  %v110 = vld [vmem:[#allocation2 + $0xb0] sm:$0xff]
  %v111 = vld [vmem:[#allocation2 + $0xb8] sm:$0xff]
  %v112 = vld [vmem:[#allocation2 + $0xc0] sm:$0xff]
  %v113 = vld [vmem:[#allocation2 + $0xc8] sm:$0xff]
  %v114 = vld [vmem:[#allocation2 + $0xd0] sm:$0xff]
  %v115 = vld [vmem:[#allocation2 + $0xd8] sm:$0xff]
  %v116 = vld [vmem:[#allocation2 + $0xe0] sm:$0xff]
  %v117 = vld [vmem:[#allocation2 + $0xe8] sm:$0xff]
  %v118 = vld [vmem:[#allocation2 + $0xf0] sm:$0xff]
  %v119 = vld [vmem:[#allocation2 + $0xf8] sm:$0xff]
  %v120 = vld [vmem:[%s0] sm:$0xff]
  %v121 = vld [vmem:[%s0 + $0x8] sm:$0xff]
  %v122 = vld [vmem:[%s0 + $0x10] sm:$0xff]
  %v123 = vld [vmem:[%s0 + $0x18] sm:$0xff]
  %v124 = vld [vmem:[%s0 + $0x20] sm:$0xff]
  %v125 = vld [vmem:[%s0 + $0x28] sm:$0xff]
  %v126 = vld [vmem:[%s0 + $0x30] sm:$0xff]
  %v127 = vld [vmem:[%s0 + $0x38] sm:$0xff]
  %v128 = vld [vmem:[%s0 + $0x40] sm:$0xff]
  %v129 = vld [vmem:[%s0 + $0x48] sm:$0xff]
  %v130 = vld [vmem:[%s0 + $0x50] sm:$0xff]
  %v131 = vld [vmem:[%s0 + $0x58] sm:$0xff]
  %v132 = vld [vmem:[%s0 + $0x60] sm:$0xff]
  %v133 = vld [vmem:[%s0 + $0x68] sm:$0xff]
  %v134 = vld [vmem:[%s0 + $0x70] sm:$0xff]
  %v135 = vld [vmem:[%s0 + $0x78] sm:$0xff]
  %v136 = vld [vmem:[%s0 + $0x80] sm:$0xff]
  %v137 = vld [vmem:[%s0 + $0x88] sm:$0xff]
  %v138 = vld [vmem:[%s0 + $0x90] sm:$0xff]
  %v139 = vld [vmem:[%s0 + $0x98] sm:$0xff]
  %v140 = vld [vmem:[%s0 + $0xa0] sm:$0xff]
  %v141 = vld [vmem:[%s0 + $0xa8] sm:$0xff]
  %v142 = vld [vmem:[%s0 + $0xb0] sm:$0xff]
  %v143 = vld [vmem:[%s0 + $0xb8] sm:$0xff]
  %v144 = vld [vmem:[%s0 + $0xc0] sm:$0xff]
  %v145 = vld [vmem:[%s0 + $0xc8] sm:$0xff]
  %v146 = vld [vmem:[%s0 + $0xd0] sm:$0xff]
  %v147 = vld [vmem:[%s0 + $0xd8] sm:$0xff]
  %v148 = vld [vmem:[%s0 + $0xe0] sm:$0xff]
  %v149 = vld [vmem:[%s0 + $0xe8] sm:$0xff]
  %v150 = vld [vmem:[%s0 + $0xf0] sm:$0xff]
  %v151 = vld [vmem:[%s0 + $0xf8] sm:$0xff]
  %v184 = vunpack.c.l.b16 %v120
  %v185 = vunpack.c.h.b16 %v120
  %v186 = vunpack.c.l.b16 %v121
  %v187 = vunpack.c.h.b16 %v121
  %v188 = vunpack.c.l.b16 %v122
  %v189 = vunpack.c.h.b16 %v122
  %v190 = vunpack.c.l.b16 %v123
  %v191 = vunpack.c.h.b16 %v123
  %v192 = vunpack.c.l.b16 %v124
  %v193 = vunpack.c.h.b16 %v124
  %v194 = vunpack.c.l.b16 %v125
  %v195 = vunpack.c.h.b16 %v125
  %v196 = vunpack.c.l.b16 %v126
  %v197 = vunpack.c.h.b16 %v126
  %v198 = vunpack.c.l.b16 %v127
  %v199 = vunpack.c.h.b16 %v127
  %v200 = vunpack.c.l.b16 %v128
  %v201 = vunpack.c.h.b16 %v128
  %v202 = vunpack.c.l.b16 %v129
  %v203 = vunpack.c.h.b16 %v129
  %v204 = vunpack.c.l.b16 %v130
  %v205 = vunpack.c.h.b16 %v130
  %v206 = vunpack.c.l.b16 %v131
  %v207 = vunpack.c.h.b16 %v131
  %v208 = vunpack.c.l.b16 %v132
  %v209 = vunpack.c.h.b16 %v132
  %v210 = vunpack.c.l.b16 %v133
  %v211 = vunpack.c.h.b16 %v133
  %v212 = vunpack.c.l.b16 %v134
  %v213 = vunpack.c.h.b16 %v134
  %v214 = vunpack.c.l.b16 %v135
  %v215 = vunpack.c.h.b16 %v135
  %v216 = vunpack.c.l.b16 %v136
  %v217 = vunpack.c.h.b16 %v136
  %v218 = vunpack.c.l.b16 %v137
  %v219 = vunpack.c.h.b16 %v137
  %v220 = vunpack.c.l.b16 %v138
  %v221 = vunpack.c.h.b16 %v138
  %v222 = vunpack.c.l.b16 %v139
  %v223 = vunpack.c.h.b16 %v139
  %v224 = vunpack.c.l.b16 %v140
  %v225 = vunpack.c.h.b16 %v140
  %v226 = vunpack.c.l.b16 %v141
  %v227 = vunpack.c.h.b16 %v141
  %v228 = vunpack.c.l.b16 %v142
  %v229 = vunpack.c.h.b16 %v142
  %v230 = vunpack.c.l.b16 %v143
  %v231 = vunpack.c.h.b16 %v143
  %v232 = vunpack.c.l.b16 %v144
  %v233 = vunpack.c.h.b16 %v144
  %v234 = vunpack.c.l.b16 %v145
  %v235 = vunpack.c.h.b16 %v145
  %v236 = vunpack.c.l.b16 %v146
  %v237 = vunpack.c.h.b16 %v146
  %v238 = vunpack.c.l.b16 %v147
  %v239 = vunpack.c.h.b16 %v147
  %v240 = vunpack.c.l.b16 %v148
  %v241 = vunpack.c.h.b16 %v148
  %v242 = vunpack.c.l.b16 %v149
  %v243 = vunpack.c.h.b16 %v149
  %v244 = vunpack.c.l.b16 %v150
  %v245 = vunpack.c.h.b16 %v150
  %v246 = vunpack.c.l.b16 %v151
  %v247 = vunpack.c.h.b16 %v151
  %v248 = vpack.c.b16 %v186, %v184
  %v249 = vpack.c.b16 %v187, %v185
  %v250 = vpack.c.b16 %v190, %v188
  %v251 = vpack.c.b16 %v191, %v189
  %v252 = vpack.c.b16 %v194, %v192
  %v253 = vpack.c.b16 %v195, %v193
  %v254 = vpack.c.b16 %v198, %v196
  %v255 = vpack.c.b16 %v199, %v197
  %v256 = vpack.c.b16 %v202, %v200
  %v257 = vpack.c.b16 %v203, %v201
  %v258 = vpack.c.b16 %v206, %v204
  %v259 = vpack.c.b16 %v207, %v205
  %v260 = vpack.c.b16 %v210, %v208
  %v261 = vpack.c.b16 %v211, %v209
  %v262 = vpack.c.b16 %v214, %v212
  %v263 = vpack.c.b16 %v215, %v213
  %v264 = vpack.c.b16 %v218, %v216
  %v265 = vpack.c.b16 %v219, %v217
  %v266 = vpack.c.b16 %v222, %v220
  %v267 = vpack.c.b16 %v223, %v221
  %v268 = vpack.c.b16 %v226, %v224
  %v269 = vpack.c.b16 %v227, %v225
  %v270 = vpack.c.b16 %v230, %v228
  %v271 = vpack.c.b16 %v231, %v229
  %v272 = vpack.c.b16 %v234, %v232
  %v273 = vpack.c.b16 %v235, %v233
  %v274 = vpack.c.b16 %v238, %v236
  %v275 = vpack.c.b16 %v239, %v237
  %v276 = vpack.c.b16 %v242, %v240
  %v277 = vpack.c.b16 %v243, %v241
  %v278 = vpack.c.b16 %v246, %v244
  %v279 = vpack.c.b16 %v247, %v245
  %v344 = vunpack.c.l.b16 %v56
  %v345 = vunpack.c.l.b16 %v57
  %v346 = vunpack.c.l.b16 %v58
  %v347 = vunpack.c.l.b16 %v59
  %v348 = vunpack.c.l.b16 %v60
  %v349 = vunpack.c.l.b16 %v61
  %v350 = vunpack.c.l.b16 %v62
  %v351 = vunpack.c.l.b16 %v63
  %v352 = vunpack.c.l.b16 %v64
  %v353 = vunpack.c.l.b16 %v65
  %v354 = vunpack.c.l.b16 %v66
  %v355 = vunpack.c.l.b16 %v67
  %v356 = vunpack.c.l.b16 %v68
  %v357 = vunpack.c.l.b16 %v69
  %v358 = vunpack.c.l.b16 %v70
  %v359 = vunpack.c.l.b16 %v71
  %v360 = vunpack.c.l.b16 %v72
  %v361 = vunpack.c.l.b16 %v73
  %v362 = vunpack.c.l.b16 %v74
  %v363 = vunpack.c.l.b16 %v75
  %v364 = vunpack.c.l.b16 %v76
  %v365 = vunpack.c.l.b16 %v77
  %v366 = vunpack.c.l.b16 %v78
  %v367 = vunpack.c.l.b16 %v79
  %v368 = vunpack.c.l.b16 %v80
  %v369 = vunpack.c.l.b16 %v81
  %v370 = vunpack.c.l.b16 %v82
  %v371 = vunpack.c.l.b16 %v83
  %v372 = vunpack.c.l.b16 %v84
  %v373 = vunpack.c.l.b16 %v85
  %v374 = vunpack.c.l.b16 %v86
  %v375 = vunpack.c.l.b16 %v87
  %v376 = vpack.c.b16 %v345, %v344
  %v377 = vpack.c.b16 %v347, %v346
  %v378 = vpack.c.b16 %v349, %v348
  %v379 = vpack.c.b16 %v351, %v350
  %v380 = vpack.c.b16 %v353, %v352
  %v381 = vpack.c.b16 %v355, %v354
  %v382 = vpack.c.b16 %v357, %v356
  %v383 = vpack.c.b16 %v359, %v358
  %v384 = vpack.c.b16 %v361, %v360
  %v385 = vpack.c.b16 %v363, %v362
  %v386 = vpack.c.b16 %v365, %v364
  %v387 = vpack.c.b16 %v367, %v366
  %v388 = vpack.c.b16 %v369, %v368
  %v389 = vpack.c.b16 %v371, %v370
  %v390 = vpack.c.b16 %v373, %v372
  %v391 = vpack.c.b16 %v375, %v374
  %408 = vmatprep.subr.bf16.mxu0 0
  %409 = vmatpush1.bf16.msra.mxu0 %v376
  %410 = vmatprep.subr.bf16.mxu0 0
  %411 = vmatpush1.bf16.msra.mxu0 %v377
  %412 = vmatprep.subr.bf16.mxu0 0
  %413 = vmatpush1.bf16.msra.mxu0 %v378
  %414 = vmatprep.subr.bf16.mxu0 0
  %415 = vmatpush1.bf16.msra.mxu0 %v379
  %416 = vmatprep.subr.bf16.mxu0 0
  %417 = vmatpush1.bf16.msra.mxu0 %v380
  %418 = vmatprep.subr.bf16.mxu0 0
  %419 = vmatpush1.bf16.msra.mxu0 %v381
  %420 = vmatprep.subr.bf16.mxu0 0
  %421 = vmatpush1.bf16.msra.mxu0 %v382
  %422 = vmatprep.subr.bf16.mxu0 0
  %423 = vmatpush1.bf16.msra.mxu0 %v383
  %424 = vmatprep.subr.bf16.mxu0 0
  %425 = vmatpush1.bf16.msra.mxu0 %v384
  %426 = vmatprep.subr.bf16.mxu0 0
  %427 = vmatpush1.bf16.msra.mxu0 %v385
  %428 = vmatprep.subr.bf16.mxu0 0
  %429 = vmatpush1.bf16.msra.mxu0 %v386
  %430 = vmatprep.subr.bf16.mxu0 0
  %431 = vmatpush1.bf16.msra.mxu0 %v387
  %432 = vmatprep.subr.bf16.mxu0 0
  %433 = vmatpush1.bf16.msra.mxu0 %v388
  %434 = vmatprep.subr.bf16.mxu0 0
  %435 = vmatpush1.bf16.msra.mxu0 %v389
  %436 = vmatprep.subr.bf16.mxu0 0
  %437 = vmatpush1.bf16.msra.mxu0 %v390
  %438 = vmatprep.subr.bf16.mxu0 0
  %439 = vmatpush1.bf16.msra.mxu0 %v391
  %440 = vmatprep.mubr.bf16.mxu0 %v249
  %441 = vmatmul.mubr.bf16.gmra.mrb[0].mxu0 %v248
  %v442 = vpop.f32.mrb[0].mxu0
  %v443 = vadd.f32 0.0, %v442
  %v444 = vpop.f32.mrb[0].mxu0
  %v445 = vpop.f32.mrb[0].mxu0
  %v446 = vadd.f32 0.0, %v445
  %v447 = vpop.f32.mrb[0].mxu0
  %448 = vmatprep.mubr.bf16.mxu0 %v251
  %449 = vmatmul.mubr.bf16.gmra.mrb[0].mxu0 %v250
  %v450 = vpop.f32.mrb[0].mxu0
  %v451 = vadd.f32 0.0, %v450
  %v452 = vpop.f32.mrb[0].mxu0
  %v453 = vpop.f32.mrb[0].mxu0
  %v454 = vadd.f32 0.0, %v453
  %v455 = vpop.f32.mrb[0].mxu0
  %456 = vmatprep.mubr.bf16.mxu0 %v253
  %457 = vmatmul.mubr.bf16.gmra.mrb[0].mxu0 %v252
  %v458 = vpop.f32.mrb[0].mxu0
  %v459 = vadd.f32 0.0, %v458
  %v460 = vpop.f32.mrb[0].mxu0
  %v461 = vpop.f32.mrb[0].mxu0
  %v462 = vadd.f32 0.0, %v461
  %v463 = vpop.f32.mrb[0].mxu0
  %464 = vmatprep.mubr.bf16.mxu0 %v255
  %465 = vmatmul.mubr.bf16.gmra.mrb[0].mxu0 %v254
  %v466 = vpop.f32.mrb[0].mxu0
  %v467 = vadd.f32 0.0, %v466
  %v468 = vpop.f32.mrb[0].mxu0
  %v469 = vpop.f32.mrb[0].mxu0
  %v470 = vadd.f32 0.0, %v469
  %v471 = vpop.f32.mrb[0].mxu0
  %472 = vmatprep.mubr.bf16.mxu0 %v257
  %473 = vmatmul.mubr.bf16.gmra.mrb[0].mxu0 %v256
  %v474 = vpop.f32.mrb[0].mxu0
  %v475 = vadd.f32 0.0, %v474
  %v476 = vpop.f32.mrb[0].mxu0
  %v477 = vpop.f32.mrb[0].mxu0
  %v478 = vadd.f32 0.0, %v477
  %v479 = vpop.f32.mrb[0].mxu0
  %480 = vmatprep.mubr.bf16.mxu0 %v259
  %481 = vmatmul.mubr.bf16.gmra.mrb[0].mxu0 %v258
  %v482 = vpop.f32.mrb[0].mxu0
  %v483 = vadd.f32 0.0, %v482
  %v484 = vpop.f32.mrb[0].mxu0
  %v485 = vpop.f32.mrb[0].mxu0
  %v486 = vadd.f32 0.0, %v485
  %v487 = vpop.f32.mrb[0].mxu0
  %488 = vmatprep.mubr.bf16.mxu0 %v261
  %489 = vmatmul.mubr.bf16.gmra.mrb[0].mxu0 %v260
  %v490 = vpop.f32.mrb[0].mxu0
  %v491 = vadd.f32 0.0, %v490
  %v492 = vpop.f32.mrb[0].mxu0
  %v493 = vpop.f32.mrb[0].mxu0
  %v494 = vadd.f32 0.0, %v493
  %v495 = vpop.f32.mrb[0].mxu0
  %496 = vmatprep.mubr.bf16.mxu0 %v263
  %497 = vmatmul.mubr.bf16.gmra.mrb[0].mxu0 %v262
  %v498 = vpop.f32.mrb[0].mxu0
  %v499 = vadd.f32 0.0, %v498
  %v500 = vpop.f32.mrb[0].mxu0
  %v501 = vpop.f32.mrb[0].mxu0
  %v502 = vadd.f32 0.0, %v501
  %v503 = vpop.f32.mrb[0].mxu0
  %504 = vmatprep.mubr.bf16.mxu0 %v265
  %505 = vmatmul.mubr.bf16.gmra.mrb[0].mxu0 %v264
  %v506 = vpop.f32.mrb[0].mxu0
  %v507 = vadd.f32 0.0, %v506
  %v508 = vpop.f32.mrb[0].mxu0
  %v509 = vpop.f32.mrb[0].mxu0
  %v510 = vadd.f32 0.0, %v509
  %v511 = vpop.f32.mrb[0].mxu0
  %512 = vmatprep.mubr.bf16.mxu0 %v267
  %513 = vmatmul.mubr.bf16.gmra.mrb[0].mxu0 %v266
  %v514 = vpop.f32.mrb[0].mxu0
  %v515 = vadd.f32 0.0, %v514
  %v516 = vpop.f32.mrb[0].mxu0
  %v517 = vpop.f32.mrb[0].mxu0
  %v518 = vadd.f32 0.0, %v517
  %v519 = vpop.f32.mrb[0].mxu0
  %520 = vmatprep.mubr.bf16.mxu0 %v269
  %521 = vmatmul.mubr.bf16.gmra.mrb[0].mxu0 %v268
  %v522 = vpop.f32.mrb[0].mxu0
  %v523 = vadd.f32 0.0, %v522
  %v524 = vpop.f32.mrb[0].mxu0
  %v525 = vpop.f32.mrb[0].mxu0
  %v526 = vadd.f32 0.0, %v525
  %v527 = vpop.f32.mrb[0].mxu0
  %528 = vmatprep.mubr.bf16.mxu0 %v271
  %529 = vmatmul.mubr.bf16.gmra.mrb[0].mxu0 %v270
  %v530 = vpop.f32.mrb[0].mxu0
  %v531 = vadd.f32 0.0, %v530
  %v532 = vpop.f32.mrb[0].mxu0
  %v533 = vpop.f32.mrb[0].mxu0
  %v534 = vadd.f32 0.0, %v533
  %v535 = vpop.f32.mrb[0].mxu0
  %536 = vmatprep.mubr.bf16.mxu0 %v273
  %537 = vmatmul.mubr.bf16.gmra.mrb[0].mxu0 %v272
  %v538 = vpop.f32.mrb[0].mxu0
  %v539 = vadd.f32 0.0, %v538
  %v540 = vpop.f32.mrb[0].mxu0
  %v541 = vpop.f32.mrb[0].mxu0
  %v542 = vadd.f32 0.0, %v541
  %v543 = vpop.f32.mrb[0].mxu0
  %544 = vmatprep.mubr.bf16.mxu0 %v275
  %545 = vmatmul.mubr.bf16.gmra.mrb[0].mxu0 %v274
  %v546 = vpop.f32.mrb[0].mxu0
  %v547 = vadd.f32 0.0, %v546
  %v548 = vpop.f32.mrb[0].mxu0
  %v549 = vpop.f32.mrb[0].mxu0
  %v550 = vadd.f32 0.0, %v549
  %v551 = vpop.f32.mrb[0].mxu0
  %552 = vmatprep.mubr.bf16.mxu0 %v277
  %553 = vmatmul.mubr.bf16.gmra.mrb[0].mxu0 %v276
  %v554 = vpop.f32.mrb[0].mxu0
  %v555 = vadd.f32 0.0, %v554
  %v556 = vpop.f32.mrb[0].mxu0
  %v557 = vpop.f32.mrb[0].mxu0
  %v558 = vadd.f32 0.0, %v557
  %v559 = vpop.f32.mrb[0].mxu0
  %560 = vmatprep.mubr.bf16.mxu0 %v279
  %561 = vmatmul.mubr.bf16.gmra.mrb[0].mxu0 %v278
  %v562 = vpop.f32.mrb[0].mxu0
  %v563 = vadd.f32 0.0, %v562
  %v564 = vpop.f32.mrb[0].mxu0
  %v565 = vpop.f32.mrb[0].mxu0
  %v566 = vadd.f32 0.0, %v565
  %v567 = vpop.f32.mrb[0].mxu0
  %568 = vdwg.mxu0
  %v569 = vadd.f32 %v88, %v443
  %v570 = vadd.f32 %v89, %v446
  %v571 = vadd.f32 %v90, %v451
  %v572 = vadd.f32 %v91, %v454
  %v573 = vadd.f32 %v92, %v459
  %v574 = vadd.f32 %v93, %v462
  %v575 = vadd.f32 %v94, %v467
  %v576 = vadd.f32 %v95, %v470
  %v577 = vadd.f32 %v96, %v475
  %v578 = vadd.f32 %v97, %v478
  %v579 = vadd.f32 %v98, %v483
  %v580 = vadd.f32 %v99, %v486
  %v581 = vadd.f32 %v100, %v491
  %v582 = vadd.f32 %v101, %v494
  %v583 = vadd.f32 %v102, %v499
  %v584 = vadd.f32 %v103, %v502
  %v585 = vadd.f32 %v104, %v507
  %v586 = vadd.f32 %v105, %v510
  %v587 = vadd.f32 %v106, %v515
  %v588 = vadd.f32 %v107, %v518
  %v589 = vadd.f32 %v108, %v523
  %v590 = vadd.f32 %v109, %v526
  %v591 = vadd.f32 %v110, %v531
  %v592 = vadd.f32 %v111, %v534
  %v593 = vadd.f32 %v112, %v539
  %v594 = vadd.f32 %v113, %v542
  %v595 = vadd.f32 %v114, %v547
  %v596 = vadd.f32 %v115, %v550
  %v597 = vadd.f32 %v116, %v555
  %v598 = vadd.f32 %v117, %v558
  %v599 = vadd.f32 %v118, %v563
  %v600 = vadd.f32 %v119, %v566
  %601 = vst [vmem:[#allocation2] sm:$0xff] %v569
  %602 = vst [vmem:[#allocation2 + $0x8] sm:$0xff] %v570
  %603 = vst [vmem:[#allocation2 + $0x10] sm:$0xff] %v571
  %604 = vst [vmem:[#allocation2 + $0x18] sm:$0xff] %v572
  %605 = vst [vmem:[#allocation2 + $0x20] sm:$0xff] %v573
  %606 = vst [vmem:[#allocation2 + $0x28] sm:$0xff] %v574
  %607 = vst [vmem:[#allocation2 + $0x30] sm:$0xff] %v575
  %608 = vst [vmem:[#allocation2 + $0x38] sm:$0xff] %v576
  %609 = vst [vmem:[#allocation2 + $0x40] sm:$0xff] %v577
  %610 = vst [vmem:[#allocation2 + $0x48] sm:$0xff] %v578
  %611 = vst [vmem:[#allocation2 + $0x50] sm:$0xff] %v579
  %612 = vst [vmem:[#allocation2 + $0x58] sm:$0xff] %v580
  %613 = vst [vmem:[#allocation2 + $0x60] sm:$0xff] %v581
  %614 = vst [vmem:[#allocation2 + $0x68] sm:$0xff] %v582
  %615 = vst [vmem:[#allocation2 + $0x70] sm:$0xff] %v583
  %616 = vst [vmem:[#allocation2 + $0x78] sm:$0xff] %v584
  %617 = vst [vmem:[#allocation2 + $0x80] sm:$0xff] %v585
  %618 = vst [vmem:[#allocation2 + $0x88] sm:$0xff] %v586
  %619 = vst [vmem:[#allocation2 + $0x90] sm:$0xff] %v587
  %620 = vst [vmem:[#allocation2 + $0x98] sm:$0xff] %v588
  %621 = vst [vmem:[#allocation2 + $0xa0] sm:$0xff] %v589
  %622 = vst [vmem:[#allocation2 + $0xa8] sm:$0xff] %v590
  %623 = vst [vmem:[#allocation2 + $0xb0] sm:$0xff] %v591
  %624 = vst [vmem:[#allocation2 + $0xb8] sm:$0xff] %v592
  %625 = vst [vmem:[#allocation2 + $0xc0] sm:$0xff] %v593
  %626 = vst [vmem:[#allocation2 + $0xc8] sm:$0xff] %v594
  %627 = vst [vmem:[#allocation2 + $0xd0] sm:$0xff] %v595
  %628 = vst [vmem:[#allocation2 + $0xd8] sm:$0xff] %v596
  %629 = vst [vmem:[#allocation2 + $0xe0] sm:$0xff] %v597
  %630 = vst [vmem:[#allocation2 + $0xe8] sm:$0xff] %v598
  %631 = vst [vmem:[#allocation2 + $0xf0] sm:$0xff] %v599
  %632 = vst [vmem:[#allocation2 + $0xf8] sm:$0xff] %v600
  // Predicated region
  $region18: #{gcnet_forward.7} parent=0 // pred_check
    %p633 = pneg %p15
  $region19: #{gcnet_forward.7} parent=0 // pred_check_branch
    %635 = sbr.rel (%p633) target = $region21
  $region20: #{gcnet_forward.7} parent=0 // pred_region
    %v636 = vld [vmem:[#allocation2] sm:$0xff]
    %v637 = vld [vmem:[#allocation2 + $0x8] sm:$0xff]
    %v638 = vld [vmem:[#allocation2 + $0x10] sm:$0xff]
    %v639 = vld [vmem:[#allocation2 + $0x18] sm:$0xff]
    %v640 = vld [vmem:[#allocation2 + $0x20] sm:$0xff]
    %v641 = vld [vmem:[#allocation2 + $0x28] sm:$0xff]
    %v642 = vld [vmem:[#allocation2 + $0x30] sm:$0xff]
    %v643 = vld [vmem:[#allocation2 + $0x38] sm:$0xff]
    %v644 = vld [vmem:[#allocation2 + $0x40] sm:$0xff]
    %v645 = vld [vmem:[#allocation2 + $0x48] sm:$0xff]
    %v646 = vld [vmem:[#allocation2 + $0x50] sm:$0xff]
    %v647 = vld [vmem:[#allocation2 + $0x58] sm:$0xff]
    %v648 = vld [vmem:[#allocation2 + $0x60] sm:$0xff]
    %v649 = vld [vmem:[#allocation2 + $0x68] sm:$0xff]
    %v650 = vld [vmem:[#allocation2 + $0x70] sm:$0xff]
    %v651 = vld [vmem:[#allocation2 + $0x78] sm:$0xff]
    %v652 = vld [vmem:[#allocation2 + $0x80] sm:$0xff]
    %v653 = vld [vmem:[#allocation2 + $0x88] sm:$0xff]
    %v654 = vld [vmem:[#allocation2 + $0x90] sm:$0xff]
    %v655 = vld [vmem:[#allocation2 + $0x98] sm:$0xff]
    %v656 = vld [vmem:[#allocation2 + $0xa0] sm:$0xff]
    %v657 = vld [vmem:[#allocation2 + $0xa8] sm:$0xff]
    %v658 = vld [vmem:[#allocation2 + $0xb0] sm:$0xff]
    %v659 = vld [vmem:[#allocation2 + $0xb8] sm:$0xff]
    %v660 = vld [vmem:[#allocation2 + $0xc0] sm:$0xff]
    %v661 = vld [vmem:[#allocation2 + $0xc8] sm:$0xff]
    %v662 = vld [vmem:[#allocation2 + $0xd0] sm:$0xff]
    %v663 = vld [vmem:[#allocation2 + $0xd8] sm:$0xff]
    %v664 = vld [vmem:[#allocation2 + $0xe0] sm:$0xff]
    %v665 = vld [vmem:[#allocation2 + $0xe8] sm:$0xff]
    %v666 = vld [vmem:[#allocation2 + $0xf0] sm:$0xff]
    %v667 = vld [vmem:[#allocation2 + $0xf8] sm:$0xff]
    %v668 = vld [vmem:[%s2] sm:$0x1]
    %v670 = vlaneseq
    %v671 = vshrl.u32 %v670, 7
    %v672 = vsub.s32 0, %v671
    %v673 = vrot.slane %v668, %v672
    %v675 = vadd.f32 %v636, %v673
    %v676 = vadd.f32 %v637, %v673
    %v677 = vadd.f32 %v638, %v673
    %v678 = vadd.f32 %v639, %v673
    %v679 = vadd.f32 %v640, %v673
    %v680 = vadd.f32 %v641, %v673
    %v681 = vadd.f32 %v642, %v673
    %v682 = vadd.f32 %v643, %v673
    %v683 = vadd.f32 %v644, %v673
    %v684 = vadd.f32 %v645, %v673
    %v685 = vadd.f32 %v646, %v673
    %v686 = vadd.f32 %v647, %v673
    %v687 = vadd.f32 %v648, %v673
    %v688 = vadd.f32 %v649, %v673
    %v689 = vadd.f32 %v650, %v673
    %v690 = vadd.f32 %v651, %v673
    %v691 = vadd.f32 %v652, %v673
    %v692 = vadd.f32 %v653, %v673
    %v693 = vadd.f32 %v654, %v673
    %v694 = vadd.f32 %v655, %v673
    %v695 = vadd.f32 %v656, %v673
    %v696 = vadd.f32 %v657, %v673
    %v697 = vadd.f32 %v658, %v673
    %v698 = vadd.f32 %v659, %v673
    %v699 = vadd.f32 %v660, %v673
    %v700 = vadd.f32 %v661, %v673
    %v701 = vadd.f32 %v662, %v673
    %v702 = vadd.f32 %v663, %v673
    %v703 = vadd.f32 %v664, %v673
    %v704 = vadd.f32 %v665, %v673
    %v705 = vadd.f32 %v666, %v673
    %v706 = vadd.f32 %v667, %v673
    %v707 = vsub.f32 0.0, %v675
    %v708 = vsub.f32 0.0, %v676
    %v709 = vsub.f32 0.0, %v677
    %v710 = vsub.f32 0.0, %v678
    %v711 = vsub.f32 0.0, %v679
    %v712 = vsub.f32 0.0, %v680
    %v713 = vsub.f32 0.0, %v681
    %v714 = vsub.f32 0.0, %v682
    %v715 = vsub.f32 0.0, %v683
    %v716 = vsub.f32 0.0, %v684
    %v717 = vsub.f32 0.0, %v685
    %v718 = vsub.f32 0.0, %v686
    %v719 = vsub.f32 0.0, %v687
    %v720 = vsub.f32 0.0, %v688
    %v721 = vsub.f32 0.0, %v689
    %v722 = vsub.f32 0.0, %v690
    %v723 = vsub.f32 0.0, %v691
    %v724 = vsub.f32 0.0, %v692
    %v725 = vsub.f32 0.0, %v693
    %v726 = vsub.f32 0.0, %v694
    %v727 = vsub.f32 0.0, %v695
    %v728 = vsub.f32 0.0, %v696
    %v729 = vsub.f32 0.0, %v697
    %v730 = vsub.f32 0.0, %v698
    %v731 = vsub.f32 0.0, %v699
    %v732 = vsub.f32 0.0, %v700
    %v733 = vsub.f32 0.0, %v701
    %v734 = vsub.f32 0.0, %v702
    %v735 = vsub.f32 0.0, %v703
    %v736 = vsub.f32 0.0, %v704
    %v737 = vsub.f32 0.0, %v705
    %v738 = vsub.f32 0.0, %v706
    %v739 = vmul.f32 %v707, 1.442695
    %v740 = vpow.pop %v739
    %v741 = vmul.f32 %v708, 1.442695
    %v742 = vpow.pop %v741
    %v743 = vmul.f32 %v709, 1.442695
    %v744 = vpow.pop %v743
    %v745 = vmul.f32 %v710, 1.442695
    %v746 = vpow.pop %v745
    %v747 = vmul.f32 %v711, 1.442695
    %v748 = vpow.pop %v747
    %v749 = vmul.f32 %v712, 1.442695
    %v750 = vpow.pop %v749
    %v751 = vmul.f32 %v713, 1.442695
    %v752 = vpow.pop %v751
    %v753 = vmul.f32 %v714, 1.442695
    %v754 = vpow.pop %v753
    %v755 = vmul.f32 %v715, 1.442695
    %v756 = vpow.pop %v755
    %v757 = vmul.f32 %v716, 1.442695
    %v758 = vpow.pop %v757
    %v759 = vmul.f32 %v717, 1.442695
    %v760 = vpow.pop %v759
    %v761 = vmul.f32 %v718, 1.442695
    %v762 = vpow.pop %v761
    %v763 = vmul.f32 %v719, 1.442695
    %v764 = vpow.pop %v763
    %v765 = vmul.f32 %v720, 1.442695
    %v766 = vpow.pop %v765
    %v767 = vmul.f32 %v721, 1.442695
    %v768 = vpow.pop %v767
    %v769 = vmul.f32 %v722, 1.442695
    %v770 = vpow.pop %v769
    %v771 = vmul.f32 %v723, 1.442695
    %v772 = vpow.pop %v771
    %v773 = vmul.f32 %v724, 1.442695
    %v774 = vpow.pop %v773
    %v775 = vmul.f32 %v725, 1.442695
    %v776 = vpow.pop %v775
    %v777 = vmul.f32 %v726, 1.442695
    %v778 = vpow.pop %v777
    %v779 = vmul.f32 %v727, 1.442695
    %v780 = vpow.pop %v779
    %v781 = vmul.f32 %v728, 1.442695
    %v782 = vpow.pop %v781
    %v783 = vmul.f32 %v729, 1.442695
    %v784 = vpow.pop %v783
    %v785 = vmul.f32 %v730, 1.442695
    %v786 = vpow.pop %v785
    %v787 = vmul.f32 %v731, 1.442695
    %v788 = vpow.pop %v787
    %v789 = vmul.f32 %v732, 1.442695
    %v790 = vpow.pop %v789
    %v791 = vmul.f32 %v733, 1.442695
    %v792 = vpow.pop %v791
    %v793 = vmul.f32 %v734, 1.442695
    %v794 = vpow.pop %v793
    %v795 = vmul.f32 %v735, 1.442695
    %v796 = vpow.pop %v795
    %v797 = vmul.f32 %v736, 1.442695
    %v798 = vpow.pop %v797
    %v799 = vmul.f32 %v737, 1.442695
    %v800 = vpow.pop %v799
    %v801 = vmul.f32 %v738, 1.442695
    %v802 = vpow.pop %v801
    %v803 = vadd.f32 %v740, 1.0
    %v804 = vadd.f32 %v742, 1.0
    %v805 = vadd.f32 %v744, 1.0
    %v806 = vadd.f32 %v746, 1.0
    %v807 = vadd.f32 %v748, 1.0
    %v808 = vadd.f32 %v750, 1.0
    %v809 = vadd.f32 %v752, 1.0
    %v810 = vadd.f32 %v754, 1.0
    %v811 = vadd.f32 %v756, 1.0
    %v812 = vadd.f32 %v758, 1.0
    %v813 = vadd.f32 %v760, 1.0
    %v814 = vadd.f32 %v762, 1.0
    %v815 = vadd.f32 %v764, 1.0
    %v816 = vadd.f32 %v766, 1.0
    %v817 = vadd.f32 %v768, 1.0
    %v818 = vadd.f32 %v770, 1.0
    %v819 = vadd.f32 %v772, 1.0
    %v820 = vadd.f32 %v774, 1.0
    %v821 = vadd.f32 %v776, 1.0
    %v822 = vadd.f32 %v778, 1.0
    %v823 = vadd.f32 %v780, 1.0
    %v824 = vadd.f32 %v782, 1.0
    %v825 = vadd.f32 %v784, 1.0
    %v826 = vadd.f32 %v786, 1.0
    %v827 = vadd.f32 %v788, 1.0
    %v828 = vadd.f32 %v790, 1.0
    %v829 = vadd.f32 %v792, 1.0
    %v830 = vadd.f32 %v794, 1.0
    %v831 = vadd.f32 %v796, 1.0
    %v832 = vadd.f32 %v798, 1.0
    %v833 = vadd.f32 %v800, 1.0
    %v834 = vadd.f32 %v802, 1.0
    %v835 = vrcp.pop %v803
    %v836 = vrcp.pop %v804
    %v837 = vrcp.pop %v805
    %v838 = vrcp.pop %v806
    %v839 = vrcp.pop %v807
    %v840 = vrcp.pop %v808
    %v841 = vrcp.pop %v809
    %v842 = vrcp.pop %v810
    %v843 = vrcp.pop %v811
    %v844 = vrcp.pop %v812
    %v845 = vrcp.pop %v813
    %v846 = vrcp.pop %v814
    %v847 = vrcp.pop %v815
    %v848 = vrcp.pop %v816
    %v849 = vrcp.pop %v817
    %v850 = vrcp.pop %v818
    %v851 = vrcp.pop %v819
    %v852 = vrcp.pop %v820
    %v853 = vrcp.pop %v821
    %v854 = vrcp.pop %v822
    %v855 = vrcp.pop %v823
    %v856 = vrcp.pop %v824
    %v857 = vrcp.pop %v825
    %v858 = vrcp.pop %v826
    %v859 = vrcp.pop %v827
    %v860 = vrcp.pop %v828
    %v861 = vrcp.pop %v829
    %v862 = vrcp.pop %v830
    %v863 = vrcp.pop %v831
    %v864 = vrcp.pop %v832
    %v865 = vrcp.pop %v833
    %v866 = vrcp.pop %v834
    %867 = vst [vmem:[%s3] sm:$0xff] %v835
    %868 = vst [vmem:[%s3 + $0x8] sm:$0xff] %v836
    %869 = vst [vmem:[%s3 + $0x10] sm:$0xff] %v837
    %870 = vst [vmem:[%s3 + $0x18] sm:$0xff] %v838
    %871 = vst [vmem:[%s3 + $0x20] sm:$0xff] %v839
    %872 = vst [vmem:[%s3 + $0x28] sm:$0xff] %v840
    %873 = vst [vmem:[%s3 + $0x30] sm:$0xff] %v841
    %874 = vst [vmem:[%s3 + $0x38] sm:$0xff] %v842
    %875 = vst [vmem:[%s3 + $0x40] sm:$0xff] %v843
    %876 = vst [vmem:[%s3 + $0x48] sm:$0xff] %v844
    %877 = vst [vmem:[%s3 + $0x50] sm:$0xff] %v845
    %878 = vst [vmem:[%s3 + $0x58] sm:$0xff] %v846
    %879 = vst [vmem:[%s3 + $0x60] sm:$0xff] %v847
    %880 = vst [vmem:[%s3 + $0x68] sm:$0xff] %v848
    %881 = vst [vmem:[%s3 + $0x70] sm:$0xff] %v849
    %882 = vst [vmem:[%s3 + $0x78] sm:$0xff] %v850
    %883 = vst [vmem:[%s3 + $0x80] sm:$0xff] %v851
    %884 = vst [vmem:[%s3 + $0x88] sm:$0xff] %v852
    %885 = vst [vmem:[%s3 + $0x90] sm:$0xff] %v853
    %886 = vst [vmem:[%s3 + $0x98] sm:$0xff] %v854
    %887 = vst [vmem:[%s3 + $0xa0] sm:$0xff] %v855
    %888 = vst [vmem:[%s3 + $0xa8] sm:$0xff] %v856
    %889 = vst [vmem:[%s3 + $0xb0] sm:$0xff] %v857
    %890 = vst [vmem:[%s3 + $0xb8] sm:$0xff] %v858
    %891 = vst [vmem:[%s3 + $0xc0] sm:$0xff] %v859
    %892 = vst [vmem:[%s3 + $0xc8] sm:$0xff] %v860
    %893 = vst [vmem:[%s3 + $0xd0] sm:$0xff] %v861
    %894 = vst [vmem:[%s3 + $0xd8] sm:$0xff] %v862
    %895 = vst [vmem:[%s3 + $0xe0] sm:$0xff] %v863
    %896 = vst [vmem:[%s3 + $0xe8] sm:$0xff] %v864
    %897 = vst [vmem:[%s3 + $0xf0] sm:$0xff] %v865
    %898 = vst [vmem:[%s3 + $0xf8] sm:$0xff] %v866
  $region21: #{gcnet_forward.7} parent=0 // pred_fallthru
    _
  // Predicated region
  $region22: #{gcnet_forward.7} parent=0 // pred_check
    _
  $region23: #{gcnet_forward.7} parent=0 // pred_check_branch
    %900 = sbr.rel (0) target = $region25
  $region24: #{gcnet_forward.7} parent=0 // pred_region
    _
  $region25: #{gcnet_forward.7} parent=0 // pred_fallthru
    _
  // Predicated region
  $region26: #{gcnet_forward.7} parent=0 // pred_check
    _
  $region27: #{gcnet_forward.7} parent=0 // pred_check_branch
    %902 = sbr.rel (0) target = $region29
  $region28: #{gcnet_forward.7} parent=0 // pred_region
    _
  $region29: #{gcnet_forward.7} parent=0 // pred_fallthru
    _

// kernel: gcnet_forward.5
$region0: #{gcnet_forward.5}
  #allocation0 [shape = 'u32[]', space=smem, size = 0x4, offset = 0x4, fixed_abs, tag = 'smem constant byte address 0x4 - core index']
  #allocation1 [shape = 'u32[144,128]{1,0:T(1,128)}', space=vmem, size = 0x12000, scoped, tag = 'internal scratch']
  #allocation2 [shape = 'f32[256,128]{1,0:T(8,128)}', space=vmem, size = 0x20000, scoped, tag = 'scratch operand']
  %s0 = inlined_call_operand.vmem [shape: bf16[256,256], index: 0, kind: input, shape index: {}]
  %s1 = inlined_call_operand.vmem [shape: bf16[256,128], index: 1, kind: input, shape index: {}]
  %s2 = inlined_call_operand.vmem [shape: f32[1,128], index: 2, kind: input, shape index: {}]
  %s3 = inlined_call_operand.vmem [shape: bf16[256,128], index: 3, kind: output, shape index: {}]
  %s4 = sld [smem:[#allocation0]]
  $region30: #{gcnet_forward.5} parent=0
    _
  %s6 = ssub.s32 1, %s4
  %s7 = scalar_select 0, %s6, %s4
  // Predicated region
  $region2: #{gcnet_forward.5} parent=0 // pred_check
    _
  $region3: #{gcnet_forward.5} parent=0 // pred_check_branch
    %9 = sbr.rel (0) target = $region5
  $region4: #{gcnet_forward.5} parent=0 // pred_region
    _
  $region5: #{gcnet_forward.5} parent=0 // pred_fallthru
    _
  // Predicated region
  $region6: #{gcnet_forward.5} parent=0 // pred_check
    _
  $region7: #{gcnet_forward.5} parent=0 // pred_check_branch
    %11 = sbr.rel (0) target = $region9
  $region8: #{gcnet_forward.5} parent=0 // pred_region
    _
  $region9: #{gcnet_forward.5} parent=0 // pred_fallthru
    _
  // Predicated region
  $region10: #{gcnet_forward.5} parent=0 // pred_check
    _
  $region11: #{gcnet_forward.5} parent=0 // pred_check_branch
    %13 = sbr.rel (0) target = $region13
  $region12: #{gcnet_forward.5} parent=0 // pred_region
    _
  $region13: #{gcnet_forward.5} parent=0 // pred_fallthru
    _
  %p15 = scmp.eq.s32.totalorder 0, 0
  // Predicated region
  $region14: #{gcnet_forward.5} parent=0 // pred_check
    %p16 = pneg %p15
  $region15: #{gcnet_forward.5} parent=0 // pred_check_branch
    %18 = sbr.rel (%p16) target = $region17
  $region16: #{gcnet_forward.5} parent=0 // pred_region
    %19 = vst [vmem:[#allocation2] sm:$0xff] 0.0
    %20 = vst [vmem:[#allocation2 + $0x8] sm:$0xff] 0.0
    %21 = vst [vmem:[#allocation2 + $0x10] sm:$0xff] 0.0
    %22 = vst [vmem:[#allocation2 + $0x18] sm:$0xff] 0.0
    %23 = vst [vmem:[#allocation2 + $0x20] sm:$0xff] 0.0
    %24 = vst [vmem:[#allocation2 + $0x28] sm:$0xff] 0.0
    %25 = vst [vmem:[#allocation2 + $0x30] sm:$0xff] 0.0
    %26 = vst [vmem:[#allocation2 + $0x38] sm:$0xff] 0.0
    %27 = vst [vmem:[#allocation2 + $0x40] sm:$0xff] 0.0
    %28 = vst [vmem:[#allocation2 + $0x48] sm:$0xff] 0.0
    %29 = vst [vmem:[#allocation2 + $0x50] sm:$0xff] 0.0
    %30 = vst [vmem:[#allocation2 + $0x58] sm:$0xff] 0.0
    %31 = vst [vmem:[#allocation2 + $0x60] sm:$0xff] 0.0
    %32 = vst [vmem:[#allocation2 + $0x68] sm:$0xff] 0.0
    %33 = vst [vmem:[#allocation2 + $0x70] sm:$0xff] 0.0
    %34 = vst [vmem:[#allocation2 + $0x78] sm:$0xff] 0.0
    %35 = vst [vmem:[#allocation2 + $0x80] sm:$0xff] 0.0
    %36 = vst [vmem:[#allocation2 + $0x88] sm:$0xff] 0.0
    %37 = vst [vmem:[#allocation2 + $0x90] sm:$0xff] 0.0
    %38 = vst [vmem:[#allocation2 + $0x98] sm:$0xff] 0.0
    %39 = vst [vmem:[#allocation2 + $0xa0] sm:$0xff] 0.0
    %40 = vst [vmem:[#allocation2 + $0xa8] sm:$0xff] 0.0
    %41 = vst [vmem:[#allocation2 + $0xb0] sm:$0xff] 0.0
    %42 = vst [vmem:[#allocation2 + $0xb8] sm:$0xff] 0.0
    %43 = vst [vmem:[#allocation2 + $0xc0] sm:$0xff] 0.0
    %44 = vst [vmem:[#allocation2 + $0xc8] sm:$0xff] 0.0
    %45 = vst [vmem:[#allocation2 + $0xd0] sm:$0xff] 0.0
    %46 = vst [vmem:[#allocation2 + $0xd8] sm:$0xff] 0.0
    %47 = vst [vmem:[#allocation2 + $0xe0] sm:$0xff] 0.0
    %48 = vst [vmem:[#allocation2 + $0xe8] sm:$0xff] 0.0
    %49 = vst [vmem:[#allocation2 + $0xf0] sm:$0xff] 0.0
    %50 = vst [vmem:[#allocation2 + $0xf8] sm:$0xff] 0.0
  $region17: #{gcnet_forward.5} parent=0 // pred_fallthru
    _
  %s51 = smul.u32 0, 256
  %s52 = sshra.s32 %s51, 3
  %s53 = sand.u32 %s51, 7
  %s54 = smul.addr %s52, 4
  %s55 = scalar_lea.vmem %s1, %s54
  %v56 = vld [vmem:[%s55] sm:$0xf]
  %v57 = vld [vmem:[%s55 + $0x4] sm:$0xf]
  %v58 = vld [vmem:[%s55 + $0x8] sm:$0xf]
  %v59 = vld [vmem:[%s55 + $0xc] sm:$0xf]
  %v60 = vld [vmem:[%s55 + $0x10] sm:$0xf]
  %v61 = vld [vmem:[%s55 + $0x14] sm:$0xf]
  %v62 = vld [vmem:[%s55 + $0x18] sm:$0xf]
  %v63 = vld [vmem:[%s55 + $0x1c] sm:$0xf]
  %v64 = vld [vmem:[%s55 + $0x20] sm:$0xf]
  %v65 = vld [vmem:[%s55 + $0x24] sm:$0xf]
  %v66 = vld [vmem:[%s55 + $0x28] sm:$0xf]
  %v67 = vld [vmem:[%s55 + $0x2c] sm:$0xf]
  %v68 = vld [vmem:[%s55 + $0x30] sm:$0xf]
  %v69 = vld [vmem:[%s55 + $0x34] sm:$0xf]
  %v70 = vld [vmem:[%s55 + $0x38] sm:$0xf]
  %v71 = vld [vmem:[%s55 + $0x3c] sm:$0xf]
  %v72 = vld [vmem:[%s55 + $0x40] sm:$0xf]
  %v73 = vld [vmem:[%s55 + $0x44] sm:$0xf]
  %v74 = vld [vmem:[%s55 + $0x48] sm:$0xf]
  %v75 = vld [vmem:[%s55 + $0x4c] sm:$0xf]
  %v76 = vld [vmem:[%s55 + $0x50] sm:$0xf]
  %v77 = vld [vmem:[%s55 + $0x54] sm:$0xf]
  %v78 = vld [vmem:[%s55 + $0x58] sm:$0xf]
  %v79 = vld [vmem:[%s55 + $0x5c] sm:$0xf]
  %v80 = vld [vmem:[%s55 + $0x60] sm:$0xf]
  %v81 = vld [vmem:[%s55 + $0x64] sm:$0xf]
  %v82 = vld [vmem:[%s55 + $0x68] sm:$0xf]
  %v83 = vld [vmem:[%s55 + $0x6c] sm:$0xf]
  %v84 = vld [vmem:[%s55 + $0x70] sm:$0xf]
  %v85 = vld [vmem:[%s55 + $0x74] sm:$0xf]
  %v86 = vld [vmem:[%s55 + $0x78] sm:$0xf]
  %v87 = vld [vmem:[%s55 + $0x7c] sm:$0xf]
  %v88 = vld [vmem:[#allocation2] sm:$0xff]
  %v89 = vld [vmem:[#allocation2 + $0x8] sm:$0xff]
  %v90 = vld [vmem:[#allocation2 + $0x10] sm:$0xff]
  %v91 = vld [vmem:[#allocation2 + $0x18] sm:$0xff]
  %v92 = vld [vmem:[#allocation2 + $0x20] sm:$0xff]
  %v93 = vld [vmem:[#allocation2 + $0x28] sm:$0xff]
  %v94 = vld [vmem:[#allocation2 + $0x30] sm:$0xff]
  %v95 = vld [vmem:[#allocation2 + $0x38] sm:$0xff]
  %v96 = vld [vmem:[#allocation2 + $0x40] sm:$0xff]
  %v97 = vld [vmem:[#allocation2 + $0x48] sm:$0xff]
  %v98 = vld [vmem:[#allocation2 + $0x50] sm:$0xff]
  %v99 = vld [vmem:[#allocation2 + $0x58] sm:$0xff]
  %v100 = vld [vmem:[#allocation2 + $0x60] sm:$0xff]
  %v101 = vld [vmem:[#allocation2 + $0x68] sm:$0xff]
  %v102 = vld [vmem:[#allocation2 + $0x70] sm:$0xff]
  %v103 = vld [vmem:[#allocation2 + $0x78] sm:$0xff]
  %v104 = vld [vmem:[#allocation2 + $0x80] sm:$0xff]
  %v105 = vld [vmem:[#allocation2 + $0x88] sm:$0xff]
  %v106 = vld [vmem:[#allocation2 + $0x90] sm:$0xff]
  %v107 = vld [vmem:[#allocation2 + $0x98] sm:$0xff]
  %v108 = vld [vmem:[#allocation2 + $0xa0] sm:$0xff]
  %v109 = vld [vmem:[#allocation2 + $0xa8] sm:$0xff]
  %v110 = vld [vmem:[#allocation2 + $0xb0] sm:$0xff]
  %v111 = vld [vmem:[#allocation2 + $0xb8] sm:$0xff]
  %v112 = vld [vmem:[#allocation2 + $0xc0] sm:$0xff]
  %v113 = vld [vmem:[#allocation2 + $0xc8] sm:$0xff]
  %v114 = vld [vmem:[#allocation2 + $0xd0] sm:$0xff]
  %v115 = vld [vmem:[#allocation2 + $0xd8] sm:$0xff]
  %v116 = vld [vmem:[#allocation2 + $0xe0] sm:$0xff]
  %v117 = vld [vmem:[#allocation2 + $0xe8] sm:$0xff]
  %v118 = vld [vmem:[#allocation2 + $0xf0] sm:$0xff]
  %v119 = vld [vmem:[#allocation2 + $0xf8] sm:$0xff]
  %v120 = vld [vmem:[%s0] sm:$0xff]
  %v121 = vld [vmem:[%s0 + $0x8] sm:$0xff]
  %v122 = vld [vmem:[%s0 + $0x10] sm:$0xff]
  %v123 = vld [vmem:[%s0 + $0x18] sm:$0xff]
  %v124 = vld [vmem:[%s0 + $0x20] sm:$0xff]
  %v125 = vld [vmem:[%s0 + $0x28] sm:$0xff]
  %v126 = vld [vmem:[%s0 + $0x30] sm:$0xff]
  %v127 = vld [vmem:[%s0 + $0x38] sm:$0xff]
  %v128 = vld [vmem:[%s0 + $0x40] sm:$0xff]
  %v129 = vld [vmem:[%s0 + $0x48] sm:$0xff]
  %v130 = vld [vmem:[%s0 + $0x50] sm:$0xff]
  %v131 = vld [vmem:[%s0 + $0x58] sm:$0xff]
  %v132 = vld [vmem:[%s0 + $0x60] sm:$0xff]
  %v133 = vld [vmem:[%s0 + $0x68] sm:$0xff]
  %v134 = vld [vmem:[%s0 + $0x70] sm:$0xff]
  %v135 = vld [vmem:[%s0 + $0x78] sm:$0xff]
  %v136 = vld [vmem:[%s0 + $0x80] sm:$0xff]
  %v137 = vld [vmem:[%s0 + $0x88] sm:$0xff]
  %v138 = vld [vmem:[%s0 + $0x90] sm:$0xff]
  %v139 = vld [vmem:[%s0 + $0x98] sm:$0xff]
  %v140 = vld [vmem:[%s0 + $0xa0] sm:$0xff]
  %v141 = vld [vmem:[%s0 + $0xa8] sm:$0xff]
  %v142 = vld [vmem:[%s0 + $0xb0] sm:$0xff]
  %v143 = vld [vmem:[%s0 + $0xb8] sm:$0xff]
  %v144 = vld [vmem:[%s0 + $0xc0] sm:$0xff]
  %v145 = vld [vmem:[%s0 + $0xc8] sm:$0xff]
  %v146 = vld [vmem:[%s0 + $0xd0] sm:$0xff]
  %v147 = vld [vmem:[%s0 + $0xd8] sm:$0xff]
  %v148 = vld [vmem:[%s0 + $0xe0] sm:$0xff]
  %v149 = vld [vmem:[%s0 + $0xe8] sm:$0xff]
  %v150 = vld [vmem:[%s0 + $0xf0] sm:$0xff]
  %v151 = vld [vmem:[%s0 + $0xf8] sm:$0xff]
  %v184 = vunpack.c.l.b16 %v120
  %v185 = vunpack.c.h.b16 %v120
  %v186 = vunpack.c.l.b16 %v121
  %v187 = vunpack.c.h.b16 %v121
  %v188 = vunpack.c.l.b16 %v122
  %v189 = vunpack.c.h.b16 %v122
  %v190 = vunpack.c.l.b16 %v123
  %v191 = vunpack.c.h.b16 %v123
  %v192 = vunpack.c.l.b16 %v124
  %v193 = vunpack.c.h.b16 %v124
  %v194 = vunpack.c.l.b16 %v125
  %v195 = vunpack.c.h.b16 %v125
  %v196 = vunpack.c.l.b16 %v126
  %v197 = vunpack.c.h.b16 %v126
  %v198 = vunpack.c.l.b16 %v127
  %v199 = vunpack.c.h.b16 %v127
  %v200 = vunpack.c.l.b16 %v128
  %v201 = vunpack.c.h.b16 %v128
  %v202 = vunpack.c.l.b16 %v129
  %v203 = vunpack.c.h.b16 %v129
  %v204 = vunpack.c.l.b16 %v130
  %v205 = vunpack.c.h.b16 %v130
  %v206 = vunpack.c.l.b16 %v131
  %v207 = vunpack.c.h.b16 %v131
  %v208 = vunpack.c.l.b16 %v132
  %v209 = vunpack.c.h.b16 %v132
  %v210 = vunpack.c.l.b16 %v133
  %v211 = vunpack.c.h.b16 %v133
  %v212 = vunpack.c.l.b16 %v134
  %v213 = vunpack.c.h.b16 %v134
  %v214 = vunpack.c.l.b16 %v135
  %v215 = vunpack.c.h.b16 %v135
  %v216 = vunpack.c.l.b16 %v136
  %v217 = vunpack.c.h.b16 %v136
  %v218 = vunpack.c.l.b16 %v137
  %v219 = vunpack.c.h.b16 %v137
  %v220 = vunpack.c.l.b16 %v138
  %v221 = vunpack.c.h.b16 %v138
  %v222 = vunpack.c.l.b16 %v139
  %v223 = vunpack.c.h.b16 %v139
  %v224 = vunpack.c.l.b16 %v140
  %v225 = vunpack.c.h.b16 %v140
  %v226 = vunpack.c.l.b16 %v141
  %v227 = vunpack.c.h.b16 %v141
  %v228 = vunpack.c.l.b16 %v142
  %v229 = vunpack.c.h.b16 %v142
  %v230 = vunpack.c.l.b16 %v143
  %v231 = vunpack.c.h.b16 %v143
  %v232 = vunpack.c.l.b16 %v144
  %v233 = vunpack.c.h.b16 %v144
  %v234 = vunpack.c.l.b16 %v145
  %v235 = vunpack.c.h.b16 %v145
  %v236 = vunpack.c.l.b16 %v146
  %v237 = vunpack.c.h.b16 %v146
  %v238 = vunpack.c.l.b16 %v147
  %v239 = vunpack.c.h.b16 %v147
  %v240 = vunpack.c.l.b16 %v148
  %v241 = vunpack.c.h.b16 %v148
  %v242 = vunpack.c.l.b16 %v149
  %v243 = vunpack.c.h.b16 %v149
  %v244 = vunpack.c.l.b16 %v150
  %v245 = vunpack.c.h.b16 %v150
  %v246 = vunpack.c.l.b16 %v151
  %v247 = vunpack.c.h.b16 %v151
  %v248 = vpack.c.b16 %v186, %v184
  %v249 = vpack.c.b16 %v187, %v185
  %v250 = vpack.c.b16 %v190, %v188
  %v251 = vpack.c.b16 %v191, %v189
  %v252 = vpack.c.b16 %v194, %v192
  %v253 = vpack.c.b16 %v195, %v193
  %v254 = vpack.c.b16 %v198, %v196
  %v255 = vpack.c.b16 %v199, %v197
  %v256 = vpack.c.b16 %v202, %v200
  %v257 = vpack.c.b16 %v203, %v201
  %v258 = vpack.c.b16 %v206, %v204
  %v259 = vpack.c.b16 %v207, %v205
  %v260 = vpack.c.b16 %v210, %v208
  %v261 = vpack.c.b16 %v211, %v209
  %v262 = vpack.c.b16 %v214, %v212
  %v263 = vpack.c.b16 %v215, %v213
  %v264 = vpack.c.b16 %v218, %v216
  %v265 = vpack.c.b16 %v219, %v217
  %v266 = vpack.c.b16 %v222, %v220
  %v267 = vpack.c.b16 %v223, %v221
  %v268 = vpack.c.b16 %v226, %v224
  %v269 = vpack.c.b16 %v227, %v225
  %v270 = vpack.c.b16 %v230, %v228
  %v271 = vpack.c.b16 %v231, %v229
  %v272 = vpack.c.b16 %v234, %v232
  %v273 = vpack.c.b16 %v235, %v233
  %v274 = vpack.c.b16 %v238, %v236
  %v275 = vpack.c.b16 %v239, %v237
  %v276 = vpack.c.b16 %v242, %v240
  %v277 = vpack.c.b16 %v243, %v241
  %v278 = vpack.c.b16 %v246, %v244
  %v279 = vpack.c.b16 %v247, %v245
  %v344 = vunpack.c.l.b16 %v56
  %v345 = vunpack.c.l.b16 %v57
  %v346 = vunpack.c.l.b16 %v58
  %v347 = vunpack.c.l.b16 %v59
  %v348 = vunpack.c.l.b16 %v60
  %v349 = vunpack.c.l.b16 %v61
  %v350 = vunpack.c.l.b16 %v62
  %v351 = vunpack.c.l.b16 %v63
  %v352 = vunpack.c.l.b16 %v64
  %v353 = vunpack.c.l.b16 %v65
  %v354 = vunpack.c.l.b16 %v66
  %v355 = vunpack.c.l.b16 %v67
  %v356 = vunpack.c.l.b16 %v68
  %v357 = vunpack.c.l.b16 %v69
  %v358 = vunpack.c.l.b16 %v70
  %v359 = vunpack.c.l.b16 %v71
  %v360 = vunpack.c.l.b16 %v72
  %v361 = vunpack.c.l.b16 %v73
  %v362 = vunpack.c.l.b16 %v74
  %v363 = vunpack.c.l.b16 %v75
  %v364 = vunpack.c.l.b16 %v76
  %v365 = vunpack.c.l.b16 %v77
  %v366 = vunpack.c.l.b16 %v78
  %v367 = vunpack.c.l.b16 %v79
  %v368 = vunpack.c.l.b16 %v80
  %v369 = vunpack.c.l.b16 %v81
  %v370 = vunpack.c.l.b16 %v82
  %v371 = vunpack.c.l.b16 %v83
  %v372 = vunpack.c.l.b16 %v84
  %v373 = vunpack.c.l.b16 %v85
  %v374 = vunpack.c.l.b16 %v86
  %v375 = vunpack.c.l.b16 %v87
  %v376 = vpack.c.b16 %v345, %v344
  %v377 = vpack.c.b16 %v347, %v346
  %v378 = vpack.c.b16 %v349, %v348
  %v379 = vpack.c.b16 %v351, %v350
  %v380 = vpack.c.b16 %v353, %v352
  %v381 = vpack.c.b16 %v355, %v354
  %v382 = vpack.c.b16 %v357, %v356
  %v383 = vpack.c.b16 %v359, %v358
  %v384 = vpack.c.b16 %v361, %v360
  %v385 = vpack.c.b16 %v363, %v362
  %v386 = vpack.c.b16 %v365, %v364
  %v387 = vpack.c.b16 %v367, %v366
  %v388 = vpack.c.b16 %v369, %v368
  %v389 = vpack.c.b16 %v371, %v370
  %v390 = vpack.c.b16 %v373, %v372
  %v391 = vpack.c.b16 %v375, %v374
  %408 = vmatprep.subr.bf16.mxu0 0
  %409 = vmatpush1.bf16.msra.mxu0 %v376
  %410 = vmatprep.subr.bf16.mxu0 0
  %411 = vmatpush1.bf16.msra.mxu0 %v377
  %412 = vmatprep.subr.bf16.mxu0 0
  %413 = vmatpush1.bf16.msra.mxu0 %v378
  %414 = vmatprep.subr.bf16.mxu0 0
  %415 = vmatpush1.bf16.msra.mxu0 %v379
  %416 = vmatprep.subr.bf16.mxu0 0
  %417 = vmatpush1.bf16.msra.mxu0 %v380
  %418 = vmatprep.subr.bf16.mxu0 0
  %419 = vmatpush1.bf16.msra.mxu0 %v381
  %420 = vmatprep.subr.bf16.mxu0 0
  %421 = vmatpush1.bf16.msra.mxu0 %v382
  %422 = vmatprep.subr.bf16.mxu0 0
  %423 = vmatpush1.bf16.msra.mxu0 %v383
  %424 = vmatprep.subr.bf16.mxu0 0
  %425 = vmatpush1.bf16.msra.mxu0 %v384
  %426 = vmatprep.subr.bf16.mxu0 0
  %427 = vmatpush1.bf16.msra.mxu0 %v385
  %428 = vmatprep.subr.bf16.mxu0 0
  %429 = vmatpush1.bf16.msra.mxu0 %v386
  %430 = vmatprep.subr.bf16.mxu0 0
  %431 = vmatpush1.bf16.msra.mxu0 %v387
  %432 = vmatprep.subr.bf16.mxu0 0
  %433 = vmatpush1.bf16.msra.mxu0 %v388
  %434 = vmatprep.subr.bf16.mxu0 0
  %435 = vmatpush1.bf16.msra.mxu0 %v389
  %436 = vmatprep.subr.bf16.mxu0 0
  %437 = vmatpush1.bf16.msra.mxu0 %v390
  %438 = vmatprep.subr.bf16.mxu0 0
  %439 = vmatpush1.bf16.msra.mxu0 %v391
  %440 = vmatprep.mubr.bf16.mxu0 %v249
  %441 = vmatmul.mubr.bf16.gmra.mrb[0].mxu0 %v248
  %v442 = vpop.f32.mrb[0].mxu0
  %v443 = vadd.f32 0.0, %v442
  %v444 = vpop.f32.mrb[0].mxu0
  %v445 = vpop.f32.mrb[0].mxu0
  %v446 = vadd.f32 0.0, %v445
  %v447 = vpop.f32.mrb[0].mxu0
  %448 = vmatprep.mubr.bf16.mxu0 %v251
  %449 = vmatmul.mubr.bf16.gmra.mrb[0].mxu0 %v250
  %v450 = vpop.f32.mrb[0].mxu0
  %v451 = vadd.f32 0.0, %v450
  %v452 = vpop.f32.mrb[0].mxu0
  %v453 = vpop.f32.mrb[0].mxu0
  %v454 = vadd.f32 0.0, %v453
  %v455 = vpop.f32.mrb[0].mxu0
  %456 = vmatprep.mubr.bf16.mxu0 %v253
  %457 = vmatmul.mubr.bf16.gmra.mrb[0].mxu0 %v252
  %v458 = vpop.f32.mrb[0].mxu0
  %v459 = vadd.f32 0.0, %v458
  %v460 = vpop.f32.mrb[0].mxu0
  %v461 = vpop.f32.mrb[0].mxu0
  %v462 = vadd.f32 0.0, %v461
  %v463 = vpop.f32.mrb[0].mxu0
  %464 = vmatprep.mubr.bf16.mxu0 %v255
  %465 = vmatmul.mubr.bf16.gmra.mrb[0].mxu0 %v254
  %v466 = vpop.f32.mrb[0].mxu0
  %v467 = vadd.f32 0.0, %v466
  %v468 = vpop.f32.mrb[0].mxu0
  %v469 = vpop.f32.mrb[0].mxu0
  %v470 = vadd.f32 0.0, %v469
  %v471 = vpop.f32.mrb[0].mxu0
  %472 = vmatprep.mubr.bf16.mxu0 %v257
  %473 = vmatmul.mubr.bf16.gmra.mrb[0].mxu0 %v256
  %v474 = vpop.f32.mrb[0].mxu0
  %v475 = vadd.f32 0.0, %v474
  %v476 = vpop.f32.mrb[0].mxu0
  %v477 = vpop.f32.mrb[0].mxu0
  %v478 = vadd.f32 0.0, %v477
  %v479 = vpop.f32.mrb[0].mxu0
  %480 = vmatprep.mubr.bf16.mxu0 %v259
  %481 = vmatmul.mubr.bf16.gmra.mrb[0].mxu0 %v258
  %v482 = vpop.f32.mrb[0].mxu0
  %v483 = vadd.f32 0.0, %v482
  %v484 = vpop.f32.mrb[0].mxu0
  %v485 = vpop.f32.mrb[0].mxu0
  %v486 = vadd.f32 0.0, %v485
  %v487 = vpop.f32.mrb[0].mxu0
  %488 = vmatprep.mubr.bf16.mxu0 %v261
  %489 = vmatmul.mubr.bf16.gmra.mrb[0].mxu0 %v260
  %v490 = vpop.f32.mrb[0].mxu0
  %v491 = vadd.f32 0.0, %v490
  %v492 = vpop.f32.mrb[0].mxu0
  %v493 = vpop.f32.mrb[0].mxu0
  %v494 = vadd.f32 0.0, %v493
  %v495 = vpop.f32.mrb[0].mxu0
  %496 = vmatprep.mubr.bf16.mxu0 %v263
  %497 = vmatmul.mubr.bf16.gmra.mrb[0].mxu0 %v262
  %v498 = vpop.f32.mrb[0].mxu0
  %v499 = vadd.f32 0.0, %v498
  %v500 = vpop.f32.mrb[0].mxu0
  %v501 = vpop.f32.mrb[0].mxu0
  %v502 = vadd.f32 0.0, %v501
  %v503 = vpop.f32.mrb[0].mxu0
  %504 = vmatprep.mubr.bf16.mxu0 %v265
  %505 = vmatmul.mubr.bf16.gmra.mrb[0].mxu0 %v264
  %v506 = vpop.f32.mrb[0].mxu0
  %v507 = vadd.f32 0.0, %v506
  %v508 = vpop.f32.mrb[0].mxu0
  %v509 = vpop.f32.mrb[0].mxu0
  %v510 = vadd.f32 0.0, %v509
  %v511 = vpop.f32.mrb[0].mxu0
  %512 = vmatprep.mubr.bf16.mxu0 %v267
  %513 = vmatmul.mubr.bf16.gmra.mrb[0].mxu0 %v266
  %v514 = vpop.f32.mrb[0].mxu0
  %v515 = vadd.f32 0.0, %v514
  %v516 = vpop.f32.mrb[0].mxu0
  %v517 = vpop.f32.mrb[0].mxu0
  %v518 = vadd.f32 0.0, %v517
  %v519 = vpop.f32.mrb[0].mxu0
  %520 = vmatprep.mubr.bf16.mxu0 %v269
  %521 = vmatmul.mubr.bf16.gmra.mrb[0].mxu0 %v268
  %v522 = vpop.f32.mrb[0].mxu0
  %v523 = vadd.f32 0.0, %v522
  %v524 = vpop.f32.mrb[0].mxu0
  %v525 = vpop.f32.mrb[0].mxu0
  %v526 = vadd.f32 0.0, %v525
  %v527 = vpop.f32.mrb[0].mxu0
  %528 = vmatprep.mubr.bf16.mxu0 %v271
  %529 = vmatmul.mubr.bf16.gmra.mrb[0].mxu0 %v270
  %v530 = vpop.f32.mrb[0].mxu0
  %v531 = vadd.f32 0.0, %v530
  %v532 = vpop.f32.mrb[0].mxu0
  %v533 = vpop.f32.mrb[0].mxu0
  %v534 = vadd.f32 0.0, %v533
  %v535 = vpop.f32.mrb[0].mxu0
  %536 = vmatprep.mubr.bf16.mxu0 %v273
  %537 = vmatmul.mubr.bf16.gmra.mrb[0].mxu0 %v272
  %v538 = vpop.f32.mrb[0].mxu0
  %v539 = vadd.f32 0.0, %v538
  %v540 = vpop.f32.mrb[0].mxu0
  %v541 = vpop.f32.mrb[0].mxu0
  %v542 = vadd.f32 0.0, %v541
  %v543 = vpop.f32.mrb[0].mxu0
  %544 = vmatprep.mubr.bf16.mxu0 %v275
  %545 = vmatmul.mubr.bf16.gmra.mrb[0].mxu0 %v274
  %v546 = vpop.f32.mrb[0].mxu0
  %v547 = vadd.f32 0.0, %v546
  %v548 = vpop.f32.mrb[0].mxu0
  %v549 = vpop.f32.mrb[0].mxu0
  %v550 = vadd.f32 0.0, %v549
  %v551 = vpop.f32.mrb[0].mxu0
  %552 = vmatprep.mubr.bf16.mxu0 %v277
  %553 = vmatmul.mubr.bf16.gmra.mrb[0].mxu0 %v276
  %v554 = vpop.f32.mrb[0].mxu0
  %v555 = vadd.f32 0.0, %v554
  %v556 = vpop.f32.mrb[0].mxu0
  %v557 = vpop.f32.mrb[0].mxu0
  %v558 = vadd.f32 0.0, %v557
  %v559 = vpop.f32.mrb[0].mxu0
  %560 = vmatprep.mubr.bf16.mxu0 %v279
  %561 = vmatmul.mubr.bf16.gmra.mrb[0].mxu0 %v278
  %v562 = vpop.f32.mrb[0].mxu0
  %v563 = vadd.f32 0.0, %v562
  %v564 = vpop.f32.mrb[0].mxu0
  %v565 = vpop.f32.mrb[0].mxu0
  %v566 = vadd.f32 0.0, %v565
  %v567 = vpop.f32.mrb[0].mxu0
  %568 = vdwg.mxu0
  %v569 = vadd.f32 %v88, %v443
  %v570 = vadd.f32 %v89, %v446
  %v571 = vadd.f32 %v90, %v451
  %v572 = vadd.f32 %v91, %v454
  %v573 = vadd.f32 %v92, %v459
  %v574 = vadd.f32 %v93, %v462
  %v575 = vadd.f32 %v94, %v467
  %v576 = vadd.f32 %v95, %v470
  %v577 = vadd.f32 %v96, %v475
  %v578 = vadd.f32 %v97, %v478
  %v579 = vadd.f32 %v98, %v483
  %v580 = vadd.f32 %v99, %v486
  %v581 = vadd.f32 %v100, %v491
  %v582 = vadd.f32 %v101, %v494
  %v583 = vadd.f32 %v102, %v499
  %v584 = vadd.f32 %v103, %v502
  %v585 = vadd.f32 %v104, %v507
  %v586 = vadd.f32 %v105, %v510
  %v587 = vadd.f32 %v106, %v515
  %v588 = vadd.f32 %v107, %v518
  %v589 = vadd.f32 %v108, %v523
  %v590 = vadd.f32 %v109, %v526
  %v591 = vadd.f32 %v110, %v531
  %v592 = vadd.f32 %v111, %v534
  %v593 = vadd.f32 %v112, %v539
  %v594 = vadd.f32 %v113, %v542
  %v595 = vadd.f32 %v114, %v547
  %v596 = vadd.f32 %v115, %v550
  %v597 = vadd.f32 %v116, %v555
  %v598 = vadd.f32 %v117, %v558
  %v599 = vadd.f32 %v118, %v563
  %v600 = vadd.f32 %v119, %v566
  %601 = vst [vmem:[#allocation2] sm:$0xff] %v569
  %602 = vst [vmem:[#allocation2 + $0x8] sm:$0xff] %v570
  %603 = vst [vmem:[#allocation2 + $0x10] sm:$0xff] %v571
  %604 = vst [vmem:[#allocation2 + $0x18] sm:$0xff] %v572
  %605 = vst [vmem:[#allocation2 + $0x20] sm:$0xff] %v573
  %606 = vst [vmem:[#allocation2 + $0x28] sm:$0xff] %v574
  %607 = vst [vmem:[#allocation2 + $0x30] sm:$0xff] %v575
  %608 = vst [vmem:[#allocation2 + $0x38] sm:$0xff] %v576
  %609 = vst [vmem:[#allocation2 + $0x40] sm:$0xff] %v577
  %610 = vst [vmem:[#allocation2 + $0x48] sm:$0xff] %v578
  %611 = vst [vmem:[#allocation2 + $0x50] sm:$0xff] %v579
  %612 = vst [vmem:[#allocation2 + $0x58] sm:$0xff] %v580
  %613 = vst [vmem:[#allocation2 + $0x60] sm:$0xff] %v581
  %614 = vst [vmem:[#allocation2 + $0x68] sm:$0xff] %v582
  %615 = vst [vmem:[#allocation2 + $0x70] sm:$0xff] %v583
  %616 = vst [vmem:[#allocation2 + $0x78] sm:$0xff] %v584
  %617 = vst [vmem:[#allocation2 + $0x80] sm:$0xff] %v585
  %618 = vst [vmem:[#allocation2 + $0x88] sm:$0xff] %v586
  %619 = vst [vmem:[#allocation2 + $0x90] sm:$0xff] %v587
  %620 = vst [vmem:[#allocation2 + $0x98] sm:$0xff] %v588
  %621 = vst [vmem:[#allocation2 + $0xa0] sm:$0xff] %v589
  %622 = vst [vmem:[#allocation2 + $0xa8] sm:$0xff] %v590
  %623 = vst [vmem:[#allocation2 + $0xb0] sm:$0xff] %v591
  %624 = vst [vmem:[#allocation2 + $0xb8] sm:$0xff] %v592
  %625 = vst [vmem:[#allocation2 + $0xc0] sm:$0xff] %v593
  %626 = vst [vmem:[#allocation2 + $0xc8] sm:$0xff] %v594
  %627 = vst [vmem:[#allocation2 + $0xd0] sm:$0xff] %v595
  %628 = vst [vmem:[#allocation2 + $0xd8] sm:$0xff] %v596
  %629 = vst [vmem:[#allocation2 + $0xe0] sm:$0xff] %v597
  %630 = vst [vmem:[#allocation2 + $0xe8] sm:$0xff] %v598
  %631 = vst [vmem:[#allocation2 + $0xf0] sm:$0xff] %v599
  %632 = vst [vmem:[#allocation2 + $0xf8] sm:$0xff] %v600
  // Predicated region
  $region18: #{gcnet_forward.5} parent=0 // pred_check
    %p633 = pneg %p15
  $region19: #{gcnet_forward.5} parent=0 // pred_check_branch
    %635 = sbr.rel (%p633) target = $region21
  $region20: #{gcnet_forward.5} parent=0 // pred_region
    %v636 = vld [vmem:[#allocation2] sm:$0xff]
    %v637 = vld [vmem:[#allocation2 + $0x8] sm:$0xff]
    %v638 = vld [vmem:[#allocation2 + $0x10] sm:$0xff]
    %v639 = vld [vmem:[#allocation2 + $0x18] sm:$0xff]
    %v640 = vld [vmem:[#allocation2 + $0x20] sm:$0xff]
    %v641 = vld [vmem:[#allocation2 + $0x28] sm:$0xff]
    %v642 = vld [vmem:[#allocation2 + $0x30] sm:$0xff]
    %v643 = vld [vmem:[#allocation2 + $0x38] sm:$0xff]
    %v644 = vld [vmem:[#allocation2 + $0x40] sm:$0xff]
    %v645 = vld [vmem:[#allocation2 + $0x48] sm:$0xff]
    %v646 = vld [vmem:[#allocation2 + $0x50] sm:$0xff]
    %v647 = vld [vmem:[#allocation2 + $0x58] sm:$0xff]
    %v648 = vld [vmem:[#allocation2 + $0x60] sm:$0xff]
    %v649 = vld [vmem:[#allocation2 + $0x68] sm:$0xff]
    %v650 = vld [vmem:[#allocation2 + $0x70] sm:$0xff]
    %v651 = vld [vmem:[#allocation2 + $0x78] sm:$0xff]
    %v652 = vld [vmem:[#allocation2 + $0x80] sm:$0xff]
    %v653 = vld [vmem:[#allocation2 + $0x88] sm:$0xff]
    %v654 = vld [vmem:[#allocation2 + $0x90] sm:$0xff]
    %v655 = vld [vmem:[#allocation2 + $0x98] sm:$0xff]
    %v656 = vld [vmem:[#allocation2 + $0xa0] sm:$0xff]
    %v657 = vld [vmem:[#allocation2 + $0xa8] sm:$0xff]
    %v658 = vld [vmem:[#allocation2 + $0xb0] sm:$0xff]
    %v659 = vld [vmem:[#allocation2 + $0xb8] sm:$0xff]
    %v660 = vld [vmem:[#allocation2 + $0xc0] sm:$0xff]
    %v661 = vld [vmem:[#allocation2 + $0xc8] sm:$0xff]
    %v662 = vld [vmem:[#allocation2 + $0xd0] sm:$0xff]
    %v663 = vld [vmem:[#allocation2 + $0xd8] sm:$0xff]
    %v664 = vld [vmem:[#allocation2 + $0xe0] sm:$0xff]
    %v665 = vld [vmem:[#allocation2 + $0xe8] sm:$0xff]
    %v666 = vld [vmem:[#allocation2 + $0xf0] sm:$0xff]
    %v667 = vld [vmem:[#allocation2 + $0xf8] sm:$0xff]
    %v668 = vld [vmem:[%s2] sm:$0x1]
    %v670 = vlaneseq
    %v671 = vshrl.u32 %v670, 7
    %v672 = vsub.s32 0, %v671
    %v673 = vrot.slane %v668, %v672
    %v675 = vadd.f32 %v636, %v673
    %v676 = vadd.f32 %v637, %v673
    %v677 = vadd.f32 %v638, %v673
    %v678 = vadd.f32 %v639, %v673
    %v679 = vadd.f32 %v640, %v673
    %v680 = vadd.f32 %v641, %v673
    %v681 = vadd.f32 %v642, %v673
    %v682 = vadd.f32 %v643, %v673
    %v683 = vadd.f32 %v644, %v673
    %v684 = vadd.f32 %v645, %v673
    %v685 = vadd.f32 %v646, %v673
    %v686 = vadd.f32 %v647, %v673
    %v687 = vadd.f32 %v648, %v673
    %v688 = vadd.f32 %v649, %v673
    %v689 = vadd.f32 %v650, %v673
    %v690 = vadd.f32 %v651, %v673
    %v691 = vadd.f32 %v652, %v673
    %v692 = vadd.f32 %v653, %v673
    %v693 = vadd.f32 %v654, %v673
    %v694 = vadd.f32 %v655, %v673
    %v695 = vadd.f32 %v656, %v673
    %v696 = vadd.f32 %v657, %v673
    %v697 = vadd.f32 %v658, %v673
    %v698 = vadd.f32 %v659, %v673
    %v699 = vadd.f32 %v660, %v673
    %v700 = vadd.f32 %v661, %v673
    %v701 = vadd.f32 %v662, %v673
    %v702 = vadd.f32 %v663, %v673
    %v703 = vadd.f32 %v664, %v673
    %v704 = vadd.f32 %v665, %v673
    %v705 = vadd.f32 %v666, %v673
    %v706 = vadd.f32 %v667, %v673
    %v707 = vmax.f32 %v675, 0.0
    %v708 = vmax.f32 %v676, 0.0
    %v709 = vmax.f32 %v677, 0.0
    %v710 = vmax.f32 %v678, 0.0
    %v711 = vmax.f32 %v679, 0.0
    %v712 = vmax.f32 %v680, 0.0
    %v713 = vmax.f32 %v681, 0.0
    %v714 = vmax.f32 %v682, 0.0
    %v715 = vmax.f32 %v683, 0.0
    %v716 = vmax.f32 %v684, 0.0
    %v717 = vmax.f32 %v685, 0.0
    %v718 = vmax.f32 %v686, 0.0
    %v719 = vmax.f32 %v687, 0.0
    %v720 = vmax.f32 %v688, 0.0
    %v721 = vmax.f32 %v689, 0.0
    %v722 = vmax.f32 %v690, 0.0
    %v723 = vmax.f32 %v691, 0.0
    %v724 = vmax.f32 %v692, 0.0
    %v725 = vmax.f32 %v693, 0.0
    %v726 = vmax.f32 %v694, 0.0
    %v727 = vmax.f32 %v695, 0.0
    %v728 = vmax.f32 %v696, 0.0
    %v729 = vmax.f32 %v697, 0.0
    %v730 = vmax.f32 %v698, 0.0
    %v731 = vmax.f32 %v699, 0.0
    %v732 = vmax.f32 %v700, 0.0
    %v733 = vmax.f32 %v701, 0.0
    %v734 = vmax.f32 %v702, 0.0
    %v735 = vmax.f32 %v703, 0.0
    %v736 = vmax.f32 %v704, 0.0
    %v737 = vmax.f32 %v705, 0.0
    %v738 = vmax.f32 %v706, 0.0
    %v739 = vpack.c.bf16 %v708, %v707
    %v740 = vpack.c.bf16 %v710, %v709
    %v741 = vpack.c.bf16 %v712, %v711
    %v742 = vpack.c.bf16 %v714, %v713
    %v743 = vpack.c.bf16 %v716, %v715
    %v744 = vpack.c.bf16 %v718, %v717
    %v745 = vpack.c.bf16 %v720, %v719
    %v746 = vpack.c.bf16 %v722, %v721
    %v747 = vpack.c.bf16 %v724, %v723
    %v748 = vpack.c.bf16 %v726, %v725
    %v749 = vpack.c.bf16 %v728, %v727
    %v750 = vpack.c.bf16 %v730, %v729
    %v751 = vpack.c.bf16 %v732, %v731
    %v752 = vpack.c.bf16 %v734, %v733
    %v753 = vpack.c.bf16 %v736, %v735
    %v754 = vpack.c.bf16 %v738, %v737
    %v771 = vunpack.c.l.b16 %v739
    %v772 = vunpack.c.h.b16 %v739
    %v773 = vunpack.c.l.b16 %v740
    %v774 = vunpack.c.h.b16 %v740
    %v775 = vunpack.c.l.b16 %v741
    %v776 = vunpack.c.h.b16 %v741
    %v777 = vunpack.c.l.b16 %v742
    %v778 = vunpack.c.h.b16 %v742
    %v779 = vunpack.c.l.b16 %v743
    %v780 = vunpack.c.h.b16 %v743
    %v781 = vunpack.c.l.b16 %v744
    %v782 = vunpack.c.h.b16 %v744
    %v783 = vunpack.c.l.b16 %v745
    %v784 = vunpack.c.h.b16 %v745
    %v785 = vunpack.c.l.b16 %v746
    %v786 = vunpack.c.h.b16 %v746
    %v787 = vunpack.c.l.b16 %v747
    %v788 = vunpack.c.h.b16 %v747
    %v789 = vunpack.c.l.b16 %v748
    %v790 = vunpack.c.h.b16 %v748
    %v791 = vunpack.c.l.b16 %v749
    %v792 = vunpack.c.h.b16 %v749
    %v793 = vunpack.c.l.b16 %v750
    %v794 = vunpack.c.h.b16 %v750
    %v795 = vunpack.c.l.b16 %v751
    %v796 = vunpack.c.h.b16 %v751
    %v797 = vunpack.c.l.b16 %v752
    %v798 = vunpack.c.h.b16 %v752
    %v799 = vunpack.c.l.b16 %v753
    %v800 = vunpack.c.h.b16 %v753
    %v801 = vunpack.c.l.b16 %v754
    %v802 = vunpack.c.h.b16 %v754
    %v803 = vpack.c.b16 %v771, %v771
    %v804 = vpack.c.b16 %v772, %v772
    %v805 = vpack.c.b16 %v773, %v773
    %v806 = vpack.c.b16 %v774, %v774
    %v807 = vpack.c.b16 %v775, %v775
    %v808 = vpack.c.b16 %v776, %v776
    %v809 = vpack.c.b16 %v777, %v777
    %v810 = vpack.c.b16 %v778, %v778
    %v811 = vpack.c.b16 %v779, %v779
    %v812 = vpack.c.b16 %v780, %v780
    %v813 = vpack.c.b16 %v781, %v781
    %v814 = vpack.c.b16 %v782, %v782
    %v815 = vpack.c.b16 %v783, %v783
    %v816 = vpack.c.b16 %v784, %v784
    %v817 = vpack.c.b16 %v785, %v785
    %v818 = vpack.c.b16 %v786, %v786
    %v819 = vpack.c.b16 %v787, %v787
    %v820 = vpack.c.b16 %v788, %v788
    %v821 = vpack.c.b16 %v789, %v789
    %v822 = vpack.c.b16 %v790, %v790
    %v823 = vpack.c.b16 %v791, %v791
    %v824 = vpack.c.b16 %v792, %v792
    %v825 = vpack.c.b16 %v793, %v793
    %v826 = vpack.c.b16 %v794, %v794
    %v827 = vpack.c.b16 %v795, %v795
    %v828 = vpack.c.b16 %v796, %v796
    %v829 = vpack.c.b16 %v797, %v797
    %v830 = vpack.c.b16 %v798, %v798
    %v831 = vpack.c.b16 %v799, %v799
    %v832 = vpack.c.b16 %v800, %v800
    %v833 = vpack.c.b16 %v801, %v801
    %v834 = vpack.c.b16 %v802, %v802
    %867 = vst [vmem:[%s3] sm:$0xf] %v803
    %868 = vst [vmem:[%s3 + $0x4] sm:$0xf] %v804
    %869 = vst [vmem:[%s3 + $0x8] sm:$0xf] %v805
    %870 = vst [vmem:[%s3 + $0xc] sm:$0xf] %v806
    %871 = vst [vmem:[%s3 + $0x10] sm:$0xf] %v807
    %872 = vst [vmem:[%s3 + $0x14] sm:$0xf] %v808
    %873 = vst [vmem:[%s3 + $0x18] sm:$0xf] %v809
    %874 = vst [vmem:[%s3 + $0x1c] sm:$0xf] %v810
    %875 = vst [vmem:[%s3 + $0x20] sm:$0xf] %v811
    %876 = vst [vmem:[%s3 + $0x24] sm:$0xf] %v812
    %877 = vst [vmem:[%s3 + $0x28] sm:$0xf] %v813
    %878 = vst [vmem:[%s3 + $0x2c] sm:$0xf] %v814
    %879 = vst [vmem:[%s3 + $0x30] sm:$0xf] %v815
    %880 = vst [vmem:[%s3 + $0x34] sm:$0xf] %v816
    %881 = vst [vmem:[%s3 + $0x38] sm:$0xf] %v817
    %882 = vst [vmem:[%s3 + $0x3c] sm:$0xf] %v818
    %883 = vst [vmem:[%s3 + $0x40] sm:$0xf] %v819
    %884 = vst [vmem:[%s3 + $0x44] sm:$0xf] %v820
    %885 = vst [vmem:[%s3 + $0x48] sm:$0xf] %v821
    %886 = vst [vmem:[%s3 + $0x4c] sm:$0xf] %v822
    %887 = vst [vmem:[%s3 + $0x50] sm:$0xf] %v823
    %888 = vst [vmem:[%s3 + $0x54] sm:$0xf] %v824
    %889 = vst [vmem:[%s3 + $0x58] sm:$0xf] %v825
    %890 = vst [vmem:[%s3 + $0x5c] sm:$0xf] %v826
    %891 = vst [vmem:[%s3 + $0x60] sm:$0xf] %v827
    %892 = vst [vmem:[%s3 + $0x64] sm:$0xf] %v828
    %893 = vst [vmem:[%s3 + $0x68] sm:$0xf] %v829
    %894 = vst [vmem:[%s3 + $0x6c] sm:$0xf] %v830
    %895 = vst [vmem:[%s3 + $0x70] sm:$0xf] %v831
    %896 = vst [vmem:[%s3 + $0x74] sm:$0xf] %v832
    %897 = vst [vmem:[%s3 + $0x78] sm:$0xf] %v833
    %898 = vst [vmem:[%s3 + $0x7c] sm:$0xf] %v834
  $region21: #{gcnet_forward.5} parent=0 // pred_fallthru
    _
  // Predicated region
  $region22: #{gcnet_forward.5} parent=0 // pred_check
    _
  $region23: #{gcnet_forward.5} parent=0 // pred_check_branch
    %900 = sbr.rel (0) target = $region25
  $region24: #{gcnet_forward.5} parent=0 // pred_region
    _
  $region25: #{gcnet_forward.5} parent=0 // pred_fallthru
    _
  // Predicated region
  $region26: #{gcnet_forward.5} parent=0 // pred_check
    _
  $region27: #{gcnet_forward.5} parent=0 // pred_check_branch
    %902 = sbr.rel (0) target = $region29
  $region28: #{gcnet_forward.5} parent=0 // pred_region
    _
  $region29: #{gcnet_forward.5} parent=0 // pred_fallthru
    _

</llo_original>
